<compile_context>
chip_gen: v5e
topology: v5e:2x2
jax: 0.10.0
libtpu: 0.0.40
codegen_flags: <defaults>
</compile_context>

<pallas_src>
import jax
import jax.numpy as jnp
from jax.experimental import pallas as pl
from jax.experimental.pallas import tpu as pltpu


def critic_kernel(x_ref, w1_ref, b1_ref, w2_ref, b2_ref, w3_ref, b3_ref, o_ref):
    x = x_ref[...]                                   # (d_in, TB)  batch on lanes
    w1 = w1_ref[...]                                 # (256, d_in)

    # ---- Layer 1: rank-d_in update as VPU broadcast FMAs (MXU would be 97% padded)
    h1 = b1_ref[...]                                 # (256, 1), broadcasts over lanes
    for k in range(x.shape[0]):                      # d_in = 4: static unroll
        h1 = h1 + w1[:, k:k + 1] * x[k:k + 1, :]
    h1 = jnp.maximum(h1, 0.0)                        # (256, TB) f32

    # ---- Layer 2: the only MXU matmul, full f32 (exact PyTorch parity) ---------
    h2 = jnp.dot(w2_ref[...], h1,
                 preferred_element_type=jnp.float32) + b2_ref[...]
    h2 = jnp.maximum(h2, 0.0)                        # (128, TB) f32

    # ---- Layer 3: 128 -> 1 as mul + sublane reduce; result is already the ------
    # ---- lane-dense (1, TB) output row (unmasked vst stores). ------------------
    q = jnp.sum(h2 * w3_ref[...], axis=0, keepdims=True) + b3_ref[0]
    o_ref[...] = q.astype(o_ref.dtype)               # (1, TB)


def _round_up(x, m):
    return ((x + m - 1) // m) * m


def _num_tensorcores():
    """v7x has 2 TensorCores per chip; v5e/v6e have 1 (safe default)."""
    try:
        kind = jax.devices()[0].device_kind.lower()
    except Exception:
        return 1
    return 2 if ("v7" in kind or "tpu7" in kind) else 1


def critic_forward(state, action, kparams):
    """state: (B, state_dim), action: (B, action_dim) -> (B, 1) float32 Q."""
    w1t, b1c, w2t, b2c, w3c, b3s = kparams
    state = state.astype(jnp.float32)
    action = action.astype(jnp.float32)
    B = state.shape[0]
    d_in = state.shape[1] + action.shape[1]

    # Tile selection: one grid step on single-TC chips (v5e/v6e); two balanced,
    # 128-multiple lane tiles on v7x (one per TensorCore). Footprint << VMEM.
    n_tc = _num_tensorcores()
    tb = _round_up(B, 8)
    if n_tc > 1:
        tb_split = _round_up(pl.cdiv(B, n_tc), 128)   # lane-dense per-core tile
        if tb_split < tb:
            tb = tb_split
    n_blocks = pl.cdiv(B, tb)
    Bp = n_blocks * tb

    # One merged, batch-on-lanes input ref: a single tiny DMA per grid step and
    # lane-dense intermediates/output.  The concat + transpose are ~4 KB XLA ops
    # (negligible; ideally the replay-buffer batch is built in this layout).
    x = jnp.concatenate([state, action], axis=1)      # (B, d_in)
    if Bp != B:
        # TODO(synk): round the replay-buffer batch to the tile size upstream so
        # this padding copy never runs on the hot path.
        x = jnp.pad(x, ((0, Bp - B), (0, 0)))
    x_t = x.T                                         # (d_in, Bp)

    def resident(arr):
        # Whole (tiny) weight resident in VMEM; block index never changes, so
        # Pallas fetches it once and keeps it across grid steps.
        return pl.BlockSpec(arr.shape, lambda i: (0, 0))

    out = pl.pallas_call(
        critic_kernel,
        out_shape=jax.ShapeDtypeStruct((1, Bp), jnp.float32),    # lane-dense row
        grid=(n_blocks,),
        in_specs=[
            pl.BlockSpec((d_in, tb), lambda i: (0, i)),          # batch tile
            resident(w1t), resident(b1c),
            resident(w2t), resident(b2c),
            resident(w3c),
            pl.BlockSpec(memory_space=pltpu.MemorySpace.SMEM),   # scalar b3
        ],
        out_specs=pl.BlockSpec((1, tb), lambda i: (0, i)),
        compiler_params=pltpu.CompilerParams(
            dimension_semantics=("parallel",),    # shard batch tiles across TCs (v7x)
        ),
    )(x_t, w1t, b1c, w2t, b2c, w3c, b3s)

    return out.reshape(Bp, 1)[:B]                     # (B, 1)


def init_params(key, state_dim, action_dim):
    """PyTorch-nn.Linear-like init; weight layout (in_features, out_features)."""
    d_in = state_dim + action_dim
    dims = [(d_in, 256), (256, 128), (128, 1)]
    params = []
    keys = jax.random.split(key, len(dims))
    for k, (fi, fo) in zip(keys, dims):
        kw, kb = jax.random.split(k)
        bound = 1.0 / (fi ** 0.5)
        w = jax.random.uniform(kw, (fi, fo), jnp.float32, -bound, bound)
        b = jax.random.uniform(kb, (1, fo), jnp.float32, -bound, bound)
        params += [w, b]
    return tuple(params)


def prepare_params(params):
    """One-time (outside the hot path) repack into the kernel's column layout."""
    w1, b1, w2, b2, w3, b3 = params
    w1t = w1.T                                   # (256, d_in)
    b1c = b1.T                                   # (256, 1)
    w2t = w2.T                                   # (128, 256)
    b2c = b2.T                                   # (128, 1)
    w3c = w3                                     # (128, 1) column
    b3s = b3.reshape((1,)).astype(jnp.float32)   # scalar -> SMEM
    # TODO(synk): in a training loop, keep these ~70 KB of weights VMEM-resident
    # across calls (cross-pallas_call prefetch / fuse into the training-step
    # kernel) instead of re-DMAing them on every invocation.
    return (w1t, b1c, w2t, b2c, w3c, b3s)


if __name__ == "__main__":
    # Pendulum-v0: state_dim = 3, action_dim = 1.
    state_dim, action_dim = 3, 1
    batch = 256   # batched transitions; divides the tile, so no padding path

    key = jax.random.PRNGKey(0)
    k_s, k_a, k_p = jax.random.split(key, 3)
    state = jax.random.normal(k_s, (batch, state_dim), jnp.float32)
    action = jax.random.normal(k_a, (batch, action_dim), jnp.float32)
    params = init_params(k_p, state_dim, action_dim)
    kparams = prepare_params(params)

    q = critic_forward(state, action, kparams)
    jax.block_until_ready(q)

    # Pure-JAX f32 reference (exact PyTorch forward semantics).
    w1, b1, w2, b2, w3, b3 = params
    x = jnp.concatenate([state, action], axis=1)
    h1 = jnp.maximum(x @ w1 + b1, 0.0)
    h2 = jnp.maximum(h1 @ w2 + b2, 0.0)
    ref = h2 @ w3 + b3

    assert q.shape == (batch, 1)
    err = float(jnp.max(jnp.abs(q - ref)))
    assert jnp.allclose(q, ref, atol=1e-3, rtol=1e-3), err

    print("KERNEL_OK")
</pallas_src>

<mosaic_0001>
module attributes {stable_mosaic.version = 11 : i64} {
  func.func @critic_kernel(%arg0: i32, %arg1: memref<4x256xf32, #tpu.memory_space<vmem>>, %arg2: memref<256x4xf32, #tpu.memory_space<vmem>>, %arg3: memref<256x1xf32, #tpu.memory_space<vmem>>, %arg4: memref<128x256xf32, #tpu.memory_space<vmem>>, %arg5: memref<128x1xf32, #tpu.memory_space<vmem>>, %arg6: memref<128x1xf32, #tpu.memory_space<vmem>>, %arg7: memref<1xf32, #tpu.memory_space<smem>>, %arg8: memref<1x256xf32, #tpu.memory_space<vmem>>) attributes {dimension_semantics = [#tpu.dimension_semantics<parallel>], iteration_bounds = array<i64: 1>, scalar_prefetch = 0 : i64, scratch_operands = 0 : i64, tpu.core_type = #tpu.core_type<tc>, window_params = [{transform_indices = @transform_0, window_bounds = array<i64: 4, 256>}, {pipeline_mode = #tpu.pipeline_mode<synchronous>, transform_indices = @transform_1, window_bounds = array<i64: 256, 4>}, {pipeline_mode = #tpu.pipeline_mode<synchronous>, transform_indices = @transform_2, window_bounds = array<i64: 256, 1>}, {pipeline_mode = #tpu.pipeline_mode<synchronous>, transform_indices = @transform_3, window_bounds = array<i64: 128, 256>}, {pipeline_mode = #tpu.pipeline_mode<synchronous>, transform_indices = @transform_4, window_bounds = array<i64: 128, 1>}, {pipeline_mode = #tpu.pipeline_mode<synchronous>, transform_indices = @transform_5, window_bounds = array<i64: 128, 1>}, {transform_indices = @transform_6, window_bounds = array<i64: 1>}, {transform_indices = @transform_7, window_bounds = array<i64: 1, 256>}]} {
    %c0 = arith.constant 0 : index
    %c0_0 = arith.constant 0 : index
    %0 = vector.load %arg1[%c0, %c0_0] : memref<4x256xf32, #tpu.memory_space<vmem>>, vector<4x256xf32>
    %c0_1 = arith.constant 0 : index
    %c0_2 = arith.constant 0 : index
    %1 = vector.load %arg2[%c0_1, %c0_2] : memref<256x4xf32, #tpu.memory_space<vmem>>, vector<256x4xf32>
    %c0_3 = arith.constant 0 : index
    %c0_4 = arith.constant 0 : index
    %2 = vector.load %arg3[%c0_3, %c0_4] : memref<256x1xf32, #tpu.memory_space<vmem>>, vector<256x1xf32>
    %3 = vector.extract_strided_slice %1 {offsets = [0, 0], sizes = [256, 1], strides = [1, 1]} : vector<256x4xf32> to vector<256x1xf32>
    %4 = vector.extract_strided_slice %0 {offsets = [0, 0], sizes = [1, 256], strides = [1, 1]} : vector<4x256xf32> to vector<1x256xf32>
    %5 = vector.broadcast %3 : vector<256x1xf32> to vector<256x256xf32>
    %6 = vector.broadcast %4 : vector<1x256xf32> to vector<256x256xf32>
    %7 = arith.mulf %5, %6 : vector<256x256xf32>
    %8 = vector.broadcast %2 : vector<256x1xf32> to vector<256x256xf32>
    %9 = arith.addf %8, %7 : vector<256x256xf32>
    %10 = vector.extract_strided_slice %1 {offsets = [0, 1], sizes = [256, 1], strides = [1, 1]} : vector<256x4xf32> to vector<256x1xf32>
    %11 = vector.extract_strided_slice %0 {offsets = [1, 0], sizes = [1, 256], strides = [1, 1]} : vector<4x256xf32> to vector<1x256xf32>
    %12 = vector.broadcast %10 : vector<256x1xf32> to vector<256x256xf32>
    %13 = vector.broadcast %11 : vector<1x256xf32> to vector<256x256xf32>
    %14 = arith.mulf %12, %13 : vector<256x256xf32>
    %15 = arith.addf %9, %14 : vector<256x256xf32>
    %16 = vector.extract_strided_slice %1 {offsets = [0, 2], sizes = [256, 1], strides = [1, 1]} : vector<256x4xf32> to vector<256x1xf32>
    %17 = vector.extract_strided_slice %0 {offsets = [2, 0], sizes = [1, 256], strides = [1, 1]} : vector<4x256xf32> to vector<1x256xf32>
    %18 = vector.broadcast %16 : vector<256x1xf32> to vector<256x256xf32>
    %19 = vector.broadcast %17 : vector<1x256xf32> to vector<256x256xf32>
    %20 = arith.mulf %18, %19 : vector<256x256xf32>
    %21 = arith.addf %15, %20 : vector<256x256xf32>
    %22 = vector.extract_strided_slice %1 {offsets = [0, 3], sizes = [256, 1], strides = [1, 1]} : vector<256x4xf32> to vector<256x1xf32>
    %23 = vector.extract_strided_slice %0 {offsets = [3, 0], sizes = [1, 256], strides = [1, 1]} : vector<4x256xf32> to vector<1x256xf32>
    %24 = vector.broadcast %22 : vector<256x1xf32> to vector<256x256xf32>
    %25 = vector.broadcast %23 : vector<1x256xf32> to vector<256x256xf32>
    %26 = arith.mulf %24, %25 : vector<256x256xf32>
    %27 = arith.addf %21, %26 : vector<256x256xf32>
    %cst = arith.constant 0.000000e+00 : f32
    %28 = vector.broadcast %cst : f32 to vector<256x256xf32>
    %29 = arith.maximumf %27, %28 : vector<256x256xf32>
    %c0_5 = arith.constant 0 : index
    %c0_6 = arith.constant 0 : index
    %30 = vector.load %arg4[%c0_5, %c0_6] : memref<128x256xf32, #tpu.memory_space<vmem>>, vector<128x256xf32>
    %cst_7 = arith.constant dense<0.000000e+00> : vector<128x256xf32>
    %31 = tpu.matmul %30, %29, %cst_7 {dimension_numbers = #tpu.dot_dimension_numbers<[1], [0], [0], [1], [0, 0, 1, 1], [], []>} : vector<128x256xf32>, vector<256x256xf32>, vector<128x256xf32> -> vector<128x256xf32>
    %c0_8 = arith.constant 0 : index
    %c0_9 = arith.constant 0 : index
    %32 = vector.load %arg5[%c0_8, %c0_9] : memref<128x1xf32, #tpu.memory_space<vmem>>, vector<128x1xf32>
    %33 = vector.broadcast %32 : vector<128x1xf32> to vector<128x256xf32>
    %34 = arith.addf %31, %33 : vector<128x256xf32>
    %cst_10 = arith.constant 0.000000e+00 : f32
    %35 = vector.broadcast %cst_10 : f32 to vector<128x256xf32>
    %36 = arith.maximumf %34, %35 : vector<128x256xf32>
    %c0_11 = arith.constant 0 : index
    %c0_12 = arith.constant 0 : index
    %37 = vector.load %arg6[%c0_11, %c0_12] : memref<128x1xf32, #tpu.memory_space<vmem>>, vector<128x1xf32>
    %38 = vector.broadcast %37 : vector<128x1xf32> to vector<128x256xf32>
    %39 = arith.mulf %36, %38 : vector<128x256xf32>
    %cst_13 = arith.constant dense<0.000000e+00> : vector<256xf32>
    %40 = vector.multi_reduction <add>, %39, %cst_13 [0] : vector<128x256xf32> to vector<256xf32>
    %41 = vector.shape_cast %40 : vector<256xf32> to vector<1x256xf32>
    %c0_14 = arith.constant 0 : index
    %42 = memref.load %arg7[%c0_14] : memref<1xf32, #tpu.memory_space<smem>>
    %43 = vector.broadcast %42 : f32 to vector<1x256xf32>
    %44 = arith.addf %41, %43 : vector<1x256xf32>
    %c0_15 = arith.constant 0 : index
    %c0_16 = arith.constant 0 : index
    %45 = vector.load %arg8[%c0_15, %c0_16] : memref<1x256xf32, #tpu.memory_space<vmem>>, vector<1x256xf32>
    tpu.vector_store %arg8[%c0_15, %c0_16], %44 {strides = array<i32>} : memref<1x256xf32, #tpu.memory_space<vmem>>, vector<1x256xf32>,
    return
  }
  func.func @transform_0(%arg0: i32) -> (i32, i32) {
    %c0_i32 = arith.constant 0 : i32
    %c0_i32_0 = arith.constant 0 : i32
    return %c0_i32, %arg0 : i32, i32
  }
  func.func @transform_1(%arg0: i32) -> (i32, i32) {
    %c0_i32 = arith.constant 0 : i32
    %c0_i32_0 = arith.constant 0 : i32
    %c0_i32_1 = arith.constant 0 : i32
    return %c0_i32, %c0_i32_0 : i32, i32
  }
  func.func @transform_2(%arg0: i32) -> (i32, i32) {
    %c0_i32 = arith.constant 0 : i32
    %c0_i32_0 = arith.constant 0 : i32
    %c0_i32_1 = arith.constant 0 : i32
    return %c0_i32, %c0_i32_0 : i32, i32
  }
  func.func @transform_3(%arg0: i32) -> (i32, i32) {
    %c0_i32 = arith.constant 0 : i32
    %c0_i32_0 = arith.constant 0 : i32
    %c0_i32_1 = arith.constant 0 : i32
    return %c0_i32, %c0_i32_0 : i32, i32
  }
  func.func @transform_4(%arg0: i32) -> (i32, i32) {
    %c0_i32 = arith.constant 0 : i32
    %c0_i32_0 = arith.constant 0 : i32
    %c0_i32_1 = arith.constant 0 : i32
    return %c0_i32, %c0_i32_0 : i32, i32
  }
  func.func @transform_5(%arg0: i32) -> (i32, i32) {
    %c0_i32 = arith.constant 0 : i32
    %c0_i32_0 = arith.constant 0 : i32
    %c0_i32_1 = arith.constant 0 : i32
    return %c0_i32, %c0_i32_0 : i32, i32
  }
  func.func @transform_6(%arg0: i32) -> i32 {
    %c0_i32 = arith.constant 0 : i32
    %c0_i32_0 = arith.constant 0 : i32
    return %c0_i32 : i32
  }
  func.func @transform_7(%arg0: i32) -> (i32, i32) {
    %c0_i32 = arith.constant 0 : i32
    %c0_i32_0 = arith.constant 0 : i32
    return %c0_i32, %arg0 : i32, i32
  }
}

</mosaic_0001>

<llo_original>
// kernel: tpu_custom_call.1
$region0: #{tpu_custom_call.1}
  #allocation0 [shape = 'u32[]', space=smem, size = 0x4, offset = 0x4, fixed_abs, tag = 'smem constant byte address 0x4 - core index']
  #allocation1 [shape = 'u32[72,128]{1,0:T(1,128)}', space=vmem, size = 0x9000, scoped, tag = 'internal scratch']
  #allocation2 [shape = 'f32[1]{0:T(128)S(6)}', space=smem, size = 0x200, scoped, tag = 'scoped memory for tpu_custom_call.1']
  %s0 = inlined_call_operand.vmem [shape: f32[4,256], index: 0, kind: input, shape index: {}]
  %s1 = inlined_call_operand.vmem [shape: f32[256,4], index: 1, kind: input, shape index: {}]
  %s2 = inlined_call_operand.vmem [shape: f32[256,1], index: 2, kind: input, shape index: {}]
  %s3 = inlined_call_operand.vmem [shape: f32[128,256], index: 3, kind: input, shape index: {}]
  %s4 = inlined_call_operand.vmem [shape: f32[128,1], index: 4, kind: input, shape index: {}]
  %s5 = inlined_call_operand.vmem [shape: f32[128,1], index: 5, kind: input, shape index: {}]
  %s6 = inlined_call_operand.<no memory space> [shape: f32[1], index: 6, kind: input, shape index: {}]
  %s7 = inlined_call_operand.hbm [shape: f32[1,256], index: 7, kind: output, shape index: {}]
  %s8 = sld [smem:[#allocation0]]
  $region38: #{tpu_custom_call.1} parent=0
    _
  %s10 = ssub.s32 1, %s8
  %s11 = scalar_select 0, %s10, %s8
  %12 = sst [smem:[#allocation2]] %s6
  $region1: #{tpu_custom_call.1} parent=0
    #allocation3 [shape = 'u8[1024]{0}', space=vmem, size = 0x400, scoped, tag = 'output window, operand 0, single buffered']
    #allocation4 [shape = 's32[1]{0}', space=sflag, size = 0x4, scoped, tag = 'scoped memory for tpu_custom_call.1']
    %13 = vsyncpa [#allocation4], 0
    // Predicated region
    $region2: #{tpu_custom_call.1} parent=1 // pred_check
      _
    $region3: #{tpu_custom_call.1} parent=1 // pred_check_branch
      %15 = sbr.rel (0) target = $region5
    $region4: #{tpu_custom_call.1} parent=1 // pred_region
      _
    $region5: #{tpu_custom_call.1} parent=1 // pred_fallthru
      _
    // Predicated region
    $region6: #{tpu_custom_call.1} parent=1 // pred_check
      _
    $region7: #{tpu_custom_call.1} parent=1 // pred_check_branch
      %17 = sbr.rel (0) target = $region9
    $region8: #{tpu_custom_call.1} parent=1 // pred_region
      _
    $region9: #{tpu_custom_call.1} parent=1 // pred_fallthru
      _
    // Predicated region
    $region10: #{tpu_custom_call.1} parent=1 // pred_check
      _
    $region11: #{tpu_custom_call.1} parent=1 // pred_check_branch
      %19 = sbr.rel (0) target = $region13
    $region12: #{tpu_custom_call.1} parent=1 // pred_region
      _
    $region13: #{tpu_custom_call.1} parent=1 // pred_fallthru
      _
    // Predicated region
    $region14: #{tpu_custom_call.1} parent=1 // pred_check
      _
    $region15: #{tpu_custom_call.1} parent=1 // pred_check_branch
      %21 = sbr.rel (0) target = $region17
    $region16: #{tpu_custom_call.1} parent=1 // pred_region
      _
    $region17: #{tpu_custom_call.1} parent=1 // pred_fallthru
      _
    // Predicated region
    $region18: #{tpu_custom_call.1} parent=1 // pred_check
      _
    $region19: #{tpu_custom_call.1} parent=1 // pred_check_branch
      %23 = sbr.rel (0) target = $region21
    $region20: #{tpu_custom_call.1} parent=1 // pred_region
      _
    $region21: #{tpu_custom_call.1} parent=1 // pred_fallthru
      _
    // Predicated region
    $region22: #{tpu_custom_call.1} parent=1 // pred_check
      _
    $region23: #{tpu_custom_call.1} parent=1 // pred_check_branch
      %25 = sbr.rel (0) target = $region25
    $region24: #{tpu_custom_call.1} parent=1 // pred_region
      _
    $region25: #{tpu_custom_call.1} parent=1 // pred_fallthru
      _
    // Predicated region
    $region26: #{tpu_custom_call.1} parent=1 // pred_check
      _
    $region27: #{tpu_custom_call.1} parent=1 // pred_check_branch
      %27 = sbr.rel (0) target = $region29
    $region28: #{tpu_custom_call.1} parent=1 // pred_region
      _
    $region29: #{tpu_custom_call.1} parent=1 // pred_fallthru
      _
    %v28 = vld [vmem:[%s0] sm:$0xff]
    %v29 = vld [vmem:[%s1] sm:$0xff]
    %v30 = vld [vmem:[%s1 + $0x8] sm:$0xff]
    %v31 = vld [vmem:[%s1 + $0x10] sm:$0xff]
    %v32 = vld [vmem:[%s1 + $0x18] sm:$0xff]
    %v33 = vld [vmem:[%s1 + $0x20] sm:$0xff]
    %v34 = vld [vmem:[%s1 + $0x28] sm:$0xff]
    %v35 = vld [vmem:[%s1 + $0x30] sm:$0xff]
    %v36 = vld [vmem:[%s1 + $0x38] sm:$0xff]
    %v37 = vld [vmem:[%s1 + $0x40] sm:$0xff]
    %v38 = vld [vmem:[%s1 + $0x48] sm:$0xff]
    %v39 = vld [vmem:[%s1 + $0x50] sm:$0xff]
    %v40 = vld [vmem:[%s1 + $0x58] sm:$0xff]
    %v41 = vld [vmem:[%s1 + $0x60] sm:$0xff]
    %v42 = vld [vmem:[%s1 + $0x68] sm:$0xff]
    %v43 = vld [vmem:[%s1 + $0x70] sm:$0xff]
    %v44 = vld [vmem:[%s1 + $0x78] sm:$0xff]
    %v45 = vld [vmem:[%s1 + $0x80] sm:$0xff]
    %v46 = vld [vmem:[%s1 + $0x88] sm:$0xff]
    %v47 = vld [vmem:[%s1 + $0x90] sm:$0xff]
    %v48 = vld [vmem:[%s1 + $0x98] sm:$0xff]
    %v49 = vld [vmem:[%s1 + $0xa0] sm:$0xff]
    %v50 = vld [vmem:[%s1 + $0xa8] sm:$0xff]
    %v51 = vld [vmem:[%s1 + $0xb0] sm:$0xff]
    %v52 = vld [vmem:[%s1 + $0xb8] sm:$0xff]
    %v53 = vld [vmem:[%s1 + $0xc0] sm:$0xff]
    %v54 = vld [vmem:[%s1 + $0xc8] sm:$0xff]
    %v55 = vld [vmem:[%s1 + $0xd0] sm:$0xff]
    %v56 = vld [vmem:[%s1 + $0xd8] sm:$0xff]
    %v57 = vld [vmem:[%s1 + $0xe0] sm:$0xff]
    %v58 = vld [vmem:[%s1 + $0xe8] sm:$0xff]
    %v59 = vld [vmem:[%s1 + $0xf0] sm:$0xff]
    %v60 = vld [vmem:[%s1 + $0xf8] sm:$0xff]
    %v61 = vld [vmem:[%s2] sm:$0xff]
    %v62 = vld [vmem:[%s2 + $0x8] sm:$0xff]
    %v63 = vld [vmem:[%s2 + $0x10] sm:$0xff]
    %v64 = vld [vmem:[%s2 + $0x18] sm:$0xff]
    %v65 = vld [vmem:[%s2 + $0x20] sm:$0xff]
    %v66 = vld [vmem:[%s2 + $0x28] sm:$0xff]
    %v67 = vld [vmem:[%s2 + $0x30] sm:$0xff]
    %v68 = vld [vmem:[%s2 + $0x38] sm:$0xff]
    %v69 = vld [vmem:[%s2 + $0x40] sm:$0xff]
    %v70 = vld [vmem:[%s2 + $0x48] sm:$0xff]
    %v71 = vld [vmem:[%s2 + $0x50] sm:$0xff]
    %v72 = vld [vmem:[%s2 + $0x58] sm:$0xff]
    %v73 = vld [vmem:[%s2 + $0x60] sm:$0xff]
    %v74 = vld [vmem:[%s2 + $0x68] sm:$0xff]
    %v75 = vld [vmem:[%s2 + $0x70] sm:$0xff]
    %v76 = vld [vmem:[%s2 + $0x78] sm:$0xff]
    %v77 = vld [vmem:[%s2 + $0x80] sm:$0xff]
    %v78 = vld [vmem:[%s2 + $0x88] sm:$0xff]
    %v79 = vld [vmem:[%s2 + $0x90] sm:$0xff]
    %v80 = vld [vmem:[%s2 + $0x98] sm:$0xff]
    %v81 = vld [vmem:[%s2 + $0xa0] sm:$0xff]
    %v82 = vld [vmem:[%s2 + $0xa8] sm:$0xff]
    %v83 = vld [vmem:[%s2 + $0xb0] sm:$0xff]
    %v84 = vld [vmem:[%s2 + $0xb8] sm:$0xff]
    %v85 = vld [vmem:[%s2 + $0xc0] sm:$0xff]
    %v86 = vld [vmem:[%s2 + $0xc8] sm:$0xff]
    %v87 = vld [vmem:[%s2 + $0xd0] sm:$0xff]
    %v88 = vld [vmem:[%s2 + $0xd8] sm:$0xff]
    %v89 = vld [vmem:[%s2 + $0xe0] sm:$0xff]
    %v90 = vld [vmem:[%s2 + $0xe8] sm:$0xff]
    %v91 = vld [vmem:[%s2 + $0xf0] sm:$0xff]
    %v92 = vld [vmem:[%s2 + $0xf8] sm:$0xff]
    %94 = vset.pattern.permute.xlu0 0
    %95 = vperm.xlu0 %94, %v29
    %v96 = vpop.permute.xlu0 %95
    %99 = vset.pattern.permute.xlu0 0
    %100 = vperm.xlu0 %99, %v30
    %v101 = vpop.permute.xlu0 %100
    %104 = vset.pattern.permute.xlu0 0
    %105 = vperm.xlu0 %104, %v31
    %v106 = vpop.permute.xlu0 %105
    %109 = vset.pattern.permute.xlu0 0
    %110 = vperm.xlu0 %109, %v32
    %v111 = vpop.permute.xlu0 %110
    %114 = vset.pattern.permute.xlu0 0
    %115 = vperm.xlu0 %114, %v33
    %v116 = vpop.permute.xlu0 %115
    %119 = vset.pattern.permute.xlu0 0
    %120 = vperm.xlu0 %119, %v34
    %v121 = vpop.permute.xlu0 %120
    %124 = vset.pattern.permute.xlu0 0
    %125 = vperm.xlu0 %124, %v35
    %v126 = vpop.permute.xlu0 %125
    %129 = vset.pattern.permute.xlu0 0
    %130 = vperm.xlu0 %129, %v36
    %v131 = vpop.permute.xlu0 %130
    %134 = vset.pattern.permute.xlu0 0
    %135 = vperm.xlu0 %134, %v37
    %v136 = vpop.permute.xlu0 %135
    %139 = vset.pattern.permute.xlu0 0
    %140 = vperm.xlu0 %139, %v38
    %v141 = vpop.permute.xlu0 %140
    %144 = vset.pattern.permute.xlu0 0
    %145 = vperm.xlu0 %144, %v39
    %v146 = vpop.permute.xlu0 %145
    %149 = vset.pattern.permute.xlu0 0
    %150 = vperm.xlu0 %149, %v40
    %v151 = vpop.permute.xlu0 %150
    %154 = vset.pattern.permute.xlu0 0
    %155 = vperm.xlu0 %154, %v41
    %v156 = vpop.permute.xlu0 %155
    %159 = vset.pattern.permute.xlu0 0
    %160 = vperm.xlu0 %159, %v42
    %v161 = vpop.permute.xlu0 %160
    %164 = vset.pattern.permute.xlu0 0
    %165 = vperm.xlu0 %164, %v43
    %v166 = vpop.permute.xlu0 %165
    %169 = vset.pattern.permute.xlu0 0
    %170 = vperm.xlu0 %169, %v44
    %v171 = vpop.permute.xlu0 %170
    %174 = vset.pattern.permute.xlu0 0
    %175 = vperm.xlu0 %174, %v45
    %v176 = vpop.permute.xlu0 %175
    %179 = vset.pattern.permute.xlu0 0
    %180 = vperm.xlu0 %179, %v46
    %v181 = vpop.permute.xlu0 %180
    %184 = vset.pattern.permute.xlu0 0
    %185 = vperm.xlu0 %184, %v47
    %v186 = vpop.permute.xlu0 %185
    %189 = vset.pattern.permute.xlu0 0
    %190 = vperm.xlu0 %189, %v48
    %v191 = vpop.permute.xlu0 %190
    %194 = vset.pattern.permute.xlu0 0
    %195 = vperm.xlu0 %194, %v49
    %v196 = vpop.permute.xlu0 %195
    %199 = vset.pattern.permute.xlu0 0
    %200 = vperm.xlu0 %199, %v50
    %v201 = vpop.permute.xlu0 %200
    %204 = vset.pattern.permute.xlu0 0
    %205 = vperm.xlu0 %204, %v51
    %v206 = vpop.permute.xlu0 %205
    %209 = vset.pattern.permute.xlu0 0
    %210 = vperm.xlu0 %209, %v52
    %v211 = vpop.permute.xlu0 %210
    %214 = vset.pattern.permute.xlu0 0
    %215 = vperm.xlu0 %214, %v53
    %v216 = vpop.permute.xlu0 %215
    %219 = vset.pattern.permute.xlu0 0
    %220 = vperm.xlu0 %219, %v54
    %v221 = vpop.permute.xlu0 %220
    %224 = vset.pattern.permute.xlu0 0
    %225 = vperm.xlu0 %224, %v55
    %v226 = vpop.permute.xlu0 %225
    %229 = vset.pattern.permute.xlu0 0
    %230 = vperm.xlu0 %229, %v56
    %v231 = vpop.permute.xlu0 %230
    %234 = vset.pattern.permute.xlu0 0
    %235 = vperm.xlu0 %234, %v57
    %v236 = vpop.permute.xlu0 %235
    %239 = vset.pattern.permute.xlu0 0
    %240 = vperm.xlu0 %239, %v58
    %v241 = vpop.permute.xlu0 %240
    %244 = vset.pattern.permute.xlu0 0
    %245 = vperm.xlu0 %244, %v59
    %v246 = vpop.permute.xlu0 %245
    %249 = vset.pattern.permute.xlu0 0
    %250 = vperm.xlu0 %249, %v60
    %v251 = vpop.permute.xlu0 %250
    %v254 = vperm.slane %v28, 0
    %v255 = vperm.slane %v28, 4
    %v258 = vperm.slane %v254, 0
    %v259 = vperm.slane %v255, 0
    %v260 = vmul.f32 %v96, %v258
    %v261 = vmul.f32 %v96, %v259
    %v262 = vmul.f32 %v101, %v258
    %v263 = vmul.f32 %v101, %v259
    %v264 = vmul.f32 %v106, %v258
    %v265 = vmul.f32 %v106, %v259
    %v266 = vmul.f32 %v111, %v258
    %v267 = vmul.f32 %v111, %v259
    %v268 = vmul.f32 %v116, %v258
    %v269 = vmul.f32 %v116, %v259
    %v270 = vmul.f32 %v121, %v258
    %v271 = vmul.f32 %v121, %v259
    %v272 = vmul.f32 %v126, %v258
    %v273 = vmul.f32 %v126, %v259
    %v274 = vmul.f32 %v131, %v258
    %v275 = vmul.f32 %v131, %v259
    %v276 = vmul.f32 %v136, %v258
    %v277 = vmul.f32 %v136, %v259
    %v278 = vmul.f32 %v141, %v258
    %v279 = vmul.f32 %v141, %v259
    %v280 = vmul.f32 %v146, %v258
    %v281 = vmul.f32 %v146, %v259
    %v282 = vmul.f32 %v151, %v258
    %v283 = vmul.f32 %v151, %v259
    %v284 = vmul.f32 %v156, %v258
    %v285 = vmul.f32 %v156, %v259
    %v286 = vmul.f32 %v161, %v258
    %v287 = vmul.f32 %v161, %v259
    %v288 = vmul.f32 %v166, %v258
    %v289 = vmul.f32 %v166, %v259
    %v290 = vmul.f32 %v171, %v258
    %v291 = vmul.f32 %v171, %v259
    %v292 = vmul.f32 %v176, %v258
    %v293 = vmul.f32 %v176, %v259
    %v294 = vmul.f32 %v181, %v258
    %v295 = vmul.f32 %v181, %v259
    %v296 = vmul.f32 %v186, %v258
    %v297 = vmul.f32 %v186, %v259
    %v298 = vmul.f32 %v191, %v258
    %v299 = vmul.f32 %v191, %v259
    %v300 = vmul.f32 %v196, %v258
    %v301 = vmul.f32 %v196, %v259
    %v302 = vmul.f32 %v201, %v258
    %v303 = vmul.f32 %v201, %v259
    %v304 = vmul.f32 %v206, %v258
    %v305 = vmul.f32 %v206, %v259
    %v306 = vmul.f32 %v211, %v258
    %v307 = vmul.f32 %v211, %v259
    %v308 = vmul.f32 %v216, %v258
    %v309 = vmul.f32 %v216, %v259
    %v310 = vmul.f32 %v221, %v258
    %v311 = vmul.f32 %v221, %v259
    %v312 = vmul.f32 %v226, %v258
    %v313 = vmul.f32 %v226, %v259
    %v314 = vmul.f32 %v231, %v258
    %v315 = vmul.f32 %v231, %v259
    %v316 = vmul.f32 %v236, %v258
    %v317 = vmul.f32 %v236, %v259
    %v318 = vmul.f32 %v241, %v258
    %v319 = vmul.f32 %v241, %v259
    %v320 = vmul.f32 %v246, %v258
    %v321 = vmul.f32 %v246, %v259
    %v322 = vmul.f32 %v251, %v258
    %v323 = vmul.f32 %v251, %v259
    %325 = vset.pattern.permute.xlu0 0
    %326 = vperm.xlu0 %325, %v61
    %v327 = vpop.permute.xlu0 %326
    %330 = vset.pattern.permute.xlu0 0
    %331 = vperm.xlu0 %330, %v62
    %v332 = vpop.permute.xlu0 %331
    %335 = vset.pattern.permute.xlu0 0
    %336 = vperm.xlu0 %335, %v63
    %v337 = vpop.permute.xlu0 %336
    %340 = vset.pattern.permute.xlu0 0
    %341 = vperm.xlu0 %340, %v64
    %v342 = vpop.permute.xlu0 %341
    %345 = vset.pattern.permute.xlu0 0
    %346 = vperm.xlu0 %345, %v65
    %v347 = vpop.permute.xlu0 %346
    %350 = vset.pattern.permute.xlu0 0
    %351 = vperm.xlu0 %350, %v66
    %v352 = vpop.permute.xlu0 %351
    %355 = vset.pattern.permute.xlu0 0
    %356 = vperm.xlu0 %355, %v67
    %v357 = vpop.permute.xlu0 %356
    %360 = vset.pattern.permute.xlu0 0
    %361 = vperm.xlu0 %360, %v68
    %v362 = vpop.permute.xlu0 %361
    %365 = vset.pattern.permute.xlu0 0
    %366 = vperm.xlu0 %365, %v69
    %v367 = vpop.permute.xlu0 %366
    %370 = vset.pattern.permute.xlu0 0
    %371 = vperm.xlu0 %370, %v70
    %v372 = vpop.permute.xlu0 %371
    %375 = vset.pattern.permute.xlu0 0
    %376 = vperm.xlu0 %375, %v71
    %v377 = vpop.permute.xlu0 %376
    %380 = vset.pattern.permute.xlu0 0
    %381 = vperm.xlu0 %380, %v72
    %v382 = vpop.permute.xlu0 %381
    %385 = vset.pattern.permute.xlu0 0
    %386 = vperm.xlu0 %385, %v73
    %v387 = vpop.permute.xlu0 %386
    %390 = vset.pattern.permute.xlu0 0
    %391 = vperm.xlu0 %390, %v74
    %v392 = vpop.permute.xlu0 %391
    %395 = vset.pattern.permute.xlu0 0
    %396 = vperm.xlu0 %395, %v75
    %v397 = vpop.permute.xlu0 %396
    %400 = vset.pattern.permute.xlu0 0
    %401 = vperm.xlu0 %400, %v76
    %v402 = vpop.permute.xlu0 %401
    %405 = vset.pattern.permute.xlu0 0
    %406 = vperm.xlu0 %405, %v77
    %v407 = vpop.permute.xlu0 %406
    %410 = vset.pattern.permute.xlu0 0
    %411 = vperm.xlu0 %410, %v78
    %v412 = vpop.permute.xlu0 %411
    %415 = vset.pattern.permute.xlu0 0
    %416 = vperm.xlu0 %415, %v79
    %v417 = vpop.permute.xlu0 %416
    %420 = vset.pattern.permute.xlu0 0
    %421 = vperm.xlu0 %420, %v80
    %v422 = vpop.permute.xlu0 %421
    %425 = vset.pattern.permute.xlu0 0
    %426 = vperm.xlu0 %425, %v81
    %v427 = vpop.permute.xlu0 %426
    %430 = vset.pattern.permute.xlu0 0
    %431 = vperm.xlu0 %430, %v82
    %v432 = vpop.permute.xlu0 %431
    %435 = vset.pattern.permute.xlu0 0
    %436 = vperm.xlu0 %435, %v83
    %v437 = vpop.permute.xlu0 %436
    %440 = vset.pattern.permute.xlu0 0
    %441 = vperm.xlu0 %440, %v84
    %v442 = vpop.permute.xlu0 %441
    %445 = vset.pattern.permute.xlu0 0
    %446 = vperm.xlu0 %445, %v85
    %v447 = vpop.permute.xlu0 %446
    %450 = vset.pattern.permute.xlu0 0
    %451 = vperm.xlu0 %450, %v86
    %v452 = vpop.permute.xlu0 %451
    %455 = vset.pattern.permute.xlu0 0
    %456 = vperm.xlu0 %455, %v87
    %v457 = vpop.permute.xlu0 %456
    %460 = vset.pattern.permute.xlu0 0
    %461 = vperm.xlu0 %460, %v88
    %v462 = vpop.permute.xlu0 %461
    %465 = vset.pattern.permute.xlu0 0
    %466 = vperm.xlu0 %465, %v89
    %v467 = vpop.permute.xlu0 %466
    %470 = vset.pattern.permute.xlu0 0
    %471 = vperm.xlu0 %470, %v90
    %v472 = vpop.permute.xlu0 %471
    %475 = vset.pattern.permute.xlu0 0
    %476 = vperm.xlu0 %475, %v91
    %v477 = vpop.permute.xlu0 %476
    %480 = vset.pattern.permute.xlu0 0
    %481 = vperm.xlu0 %480, %v92
    %v482 = vpop.permute.xlu0 %481
    %v484 = vadd.f32 %v327, %v260
    %v485 = vadd.f32 %v327, %v261
    %v486 = vadd.f32 %v332, %v262
    %v487 = vadd.f32 %v332, %v263
    %v488 = vadd.f32 %v337, %v264
    %v489 = vadd.f32 %v337, %v265
    %v490 = vadd.f32 %v342, %v266
    %v491 = vadd.f32 %v342, %v267
    %v492 = vadd.f32 %v347, %v268
    %v493 = vadd.f32 %v347, %v269
    %v494 = vadd.f32 %v352, %v270
    %v495 = vadd.f32 %v352, %v271
    %v496 = vadd.f32 %v357, %v272
    %v497 = vadd.f32 %v357, %v273
    %v498 = vadd.f32 %v362, %v274
    %v499 = vadd.f32 %v362, %v275
    %v500 = vadd.f32 %v367, %v276
    %v501 = vadd.f32 %v367, %v277
    %v502 = vadd.f32 %v372, %v278
    %v503 = vadd.f32 %v372, %v279
    %v504 = vadd.f32 %v377, %v280
    %v505 = vadd.f32 %v377, %v281
    %v506 = vadd.f32 %v382, %v282
    %v507 = vadd.f32 %v382, %v283
    %v508 = vadd.f32 %v387, %v284
    %v509 = vadd.f32 %v387, %v285
    %v510 = vadd.f32 %v392, %v286
    %v511 = vadd.f32 %v392, %v287
    %v512 = vadd.f32 %v397, %v288
    %v513 = vadd.f32 %v397, %v289
    %v514 = vadd.f32 %v402, %v290
    %v515 = vadd.f32 %v402, %v291
    %v516 = vadd.f32 %v407, %v292
    %v517 = vadd.f32 %v407, %v293
    %v518 = vadd.f32 %v412, %v294
    %v519 = vadd.f32 %v412, %v295
    %v520 = vadd.f32 %v417, %v296
    %v521 = vadd.f32 %v417, %v297
    %v522 = vadd.f32 %v422, %v298
    %v523 = vadd.f32 %v422, %v299
    %v524 = vadd.f32 %v427, %v300
    %v525 = vadd.f32 %v427, %v301
    %v526 = vadd.f32 %v432, %v302
    %v527 = vadd.f32 %v432, %v303
    %v528 = vadd.f32 %v437, %v304
    %v529 = vadd.f32 %v437, %v305
    %v530 = vadd.f32 %v442, %v306
    %v531 = vadd.f32 %v442, %v307
    %v532 = vadd.f32 %v447, %v308
    %v533 = vadd.f32 %v447, %v309
    %v534 = vadd.f32 %v452, %v310
    %v535 = vadd.f32 %v452, %v311
    %v536 = vadd.f32 %v457, %v312
    %v537 = vadd.f32 %v457, %v313
    %v538 = vadd.f32 %v462, %v314
    %v539 = vadd.f32 %v462, %v315
    %v540 = vadd.f32 %v467, %v316
    %v541 = vadd.f32 %v467, %v317
    %v542 = vadd.f32 %v472, %v318
    %v543 = vadd.f32 %v472, %v319
    %v544 = vadd.f32 %v477, %v320
    %v545 = vadd.f32 %v477, %v321
    %v546 = vadd.f32 %v482, %v322
    %v547 = vadd.f32 %v482, %v323
    %548 = vset.pattern.permute.xlu0 1
    %549 = vperm.xlu0 %548, %v29
    %v550 = vpop.permute.xlu0 %549
    %552 = vset.pattern.permute.xlu0 1
    %553 = vperm.xlu0 %552, %v30
    %v554 = vpop.permute.xlu0 %553
    %556 = vset.pattern.permute.xlu0 1
    %557 = vperm.xlu0 %556, %v31
    %v558 = vpop.permute.xlu0 %557
    %560 = vset.pattern.permute.xlu0 1
    %561 = vperm.xlu0 %560, %v32
    %v562 = vpop.permute.xlu0 %561
    %564 = vset.pattern.permute.xlu0 1
    %565 = vperm.xlu0 %564, %v33
    %v566 = vpop.permute.xlu0 %565
    %568 = vset.pattern.permute.xlu0 1
    %569 = vperm.xlu0 %568, %v34
    %v570 = vpop.permute.xlu0 %569
    %572 = vset.pattern.permute.xlu0 1
    %573 = vperm.xlu0 %572, %v35
    %v574 = vpop.permute.xlu0 %573
    %576 = vset.pattern.permute.xlu0 1
    %577 = vperm.xlu0 %576, %v36
    %v578 = vpop.permute.xlu0 %577
    %580 = vset.pattern.permute.xlu0 1
    %581 = vperm.xlu0 %580, %v37
    %v582 = vpop.permute.xlu0 %581
    %584 = vset.pattern.permute.xlu0 1
    %585 = vperm.xlu0 %584, %v38
    %v586 = vpop.permute.xlu0 %585
    %588 = vset.pattern.permute.xlu0 1
    %589 = vperm.xlu0 %588, %v39
    %v590 = vpop.permute.xlu0 %589
    %592 = vset.pattern.permute.xlu0 1
    %593 = vperm.xlu0 %592, %v40
    %v594 = vpop.permute.xlu0 %593
    %596 = vset.pattern.permute.xlu0 1
    %597 = vperm.xlu0 %596, %v41
    %v598 = vpop.permute.xlu0 %597
    %600 = vset.pattern.permute.xlu0 1
    %601 = vperm.xlu0 %600, %v42
    %v602 = vpop.permute.xlu0 %601
    %604 = vset.pattern.permute.xlu0 1
    %605 = vperm.xlu0 %604, %v43
    %v606 = vpop.permute.xlu0 %605
    %608 = vset.pattern.permute.xlu0 1
    %609 = vperm.xlu0 %608, %v44
    %v610 = vpop.permute.xlu0 %609
    %612 = vset.pattern.permute.xlu0 1
    %613 = vperm.xlu0 %612, %v45
    %v614 = vpop.permute.xlu0 %613
    %616 = vset.pattern.permute.xlu0 1
    %617 = vperm.xlu0 %616, %v46
    %v618 = vpop.permute.xlu0 %617
    %620 = vset.pattern.permute.xlu0 1
    %621 = vperm.xlu0 %620, %v47
    %v622 = vpop.permute.xlu0 %621
    %624 = vset.pattern.permute.xlu0 1
    %625 = vperm.xlu0 %624, %v48
    %v626 = vpop.permute.xlu0 %625
    %628 = vset.pattern.permute.xlu0 1
    %629 = vperm.xlu0 %628, %v49
    %v630 = vpop.permute.xlu0 %629
    %632 = vset.pattern.permute.xlu0 1
    %633 = vperm.xlu0 %632, %v50
    %v634 = vpop.permute.xlu0 %633
    %636 = vset.pattern.permute.xlu0 1
    %637 = vperm.xlu0 %636, %v51
    %v638 = vpop.permute.xlu0 %637
    %640 = vset.pattern.permute.xlu0 1
    %641 = vperm.xlu0 %640, %v52
    %v642 = vpop.permute.xlu0 %641
    %644 = vset.pattern.permute.xlu0 1
    %645 = vperm.xlu0 %644, %v53
    %v646 = vpop.permute.xlu0 %645
    %648 = vset.pattern.permute.xlu0 1
    %649 = vperm.xlu0 %648, %v54
    %v650 = vpop.permute.xlu0 %649
    %652 = vset.pattern.permute.xlu0 1
    %653 = vperm.xlu0 %652, %v55
    %v654 = vpop.permute.xlu0 %653
    %656 = vset.pattern.permute.xlu0 1
    %657 = vperm.xlu0 %656, %v56
    %v658 = vpop.permute.xlu0 %657
    %660 = vset.pattern.permute.xlu0 1
    %661 = vperm.xlu0 %660, %v57
    %v662 = vpop.permute.xlu0 %661
    %664 = vset.pattern.permute.xlu0 1
    %665 = vperm.xlu0 %664, %v58
    %v666 = vpop.permute.xlu0 %665
    %668 = vset.pattern.permute.xlu0 1
    %669 = vperm.xlu0 %668, %v59
    %v670 = vpop.permute.xlu0 %669
    %672 = vset.pattern.permute.xlu0 1
    %673 = vperm.xlu0 %672, %v60
    %v674 = vpop.permute.xlu0 %673
    %v676 = vperm.slane %v28, 1
    %v677 = vperm.slane %v28, 5
    %v680 = vperm.slane %v676, 1
    %v681 = vperm.slane %v677, 1
    %v682 = vmul.f32 %v550, %v680
    %v683 = vmul.f32 %v550, %v681
    %v684 = vmul.f32 %v554, %v680
    %v685 = vmul.f32 %v554, %v681
    %v686 = vmul.f32 %v558, %v680
    %v687 = vmul.f32 %v558, %v681
    %v688 = vmul.f32 %v562, %v680
    %v689 = vmul.f32 %v562, %v681
    %v690 = vmul.f32 %v566, %v680
    %v691 = vmul.f32 %v566, %v681
    %v692 = vmul.f32 %v570, %v680
    %v693 = vmul.f32 %v570, %v681
    %v694 = vmul.f32 %v574, %v680
    %v695 = vmul.f32 %v574, %v681
    %v696 = vmul.f32 %v578, %v680
    %v697 = vmul.f32 %v578, %v681
    %v698 = vmul.f32 %v582, %v680
    %v699 = vmul.f32 %v582, %v681
    %v700 = vmul.f32 %v586, %v680
    %v701 = vmul.f32 %v586, %v681
    %v702 = vmul.f32 %v590, %v680
    %v703 = vmul.f32 %v590, %v681
    %v704 = vmul.f32 %v594, %v680
    %v705 = vmul.f32 %v594, %v681
    %v706 = vmul.f32 %v598, %v680
    %v707 = vmul.f32 %v598, %v681
    %v708 = vmul.f32 %v602, %v680
    %v709 = vmul.f32 %v602, %v681
    %v710 = vmul.f32 %v606, %v680
    %v711 = vmul.f32 %v606, %v681
    %v712 = vmul.f32 %v610, %v680
    %v713 = vmul.f32 %v610, %v681
    %v714 = vmul.f32 %v614, %v680
    %v715 = vmul.f32 %v614, %v681
    %v716 = vmul.f32 %v618, %v680
    %v717 = vmul.f32 %v618, %v681
    %v718 = vmul.f32 %v622, %v680
    %v719 = vmul.f32 %v622, %v681
    %v720 = vmul.f32 %v626, %v680
    %v721 = vmul.f32 %v626, %v681
    %v722 = vmul.f32 %v630, %v680
    %v723 = vmul.f32 %v630, %v681
    %v724 = vmul.f32 %v634, %v680
    %v725 = vmul.f32 %v634, %v681
    %v726 = vmul.f32 %v638, %v680
    %v727 = vmul.f32 %v638, %v681
    %v728 = vmul.f32 %v642, %v680
    %v729 = vmul.f32 %v642, %v681
    %v730 = vmul.f32 %v646, %v680
    %v731 = vmul.f32 %v646, %v681
    %v732 = vmul.f32 %v650, %v680
    %v733 = vmul.f32 %v650, %v681
    %v734 = vmul.f32 %v654, %v680
    %v735 = vmul.f32 %v654, %v681
    %v736 = vmul.f32 %v658, %v680
    %v737 = vmul.f32 %v658, %v681
    %v738 = vmul.f32 %v662, %v680
    %v739 = vmul.f32 %v662, %v681
    %v740 = vmul.f32 %v666, %v680
    %v741 = vmul.f32 %v666, %v681
    %v742 = vmul.f32 %v670, %v680
    %v743 = vmul.f32 %v670, %v681
    %v744 = vmul.f32 %v674, %v680
    %v745 = vmul.f32 %v674, %v681
    %v746 = vadd.f32 %v484, %v682
    %v747 = vadd.f32 %v485, %v683
    %v748 = vadd.f32 %v486, %v684
    %v749 = vadd.f32 %v487, %v685
    %v750 = vadd.f32 %v488, %v686
    %v751 = vadd.f32 %v489, %v687
    %v752 = vadd.f32 %v490, %v688
    %v753 = vadd.f32 %v491, %v689
    %v754 = vadd.f32 %v492, %v690
    %v755 = vadd.f32 %v493, %v691
    %v756 = vadd.f32 %v494, %v692
    %v757 = vadd.f32 %v495, %v693
    %v758 = vadd.f32 %v496, %v694
    %v759 = vadd.f32 %v497, %v695
    %v760 = vadd.f32 %v498, %v696
    %v761 = vadd.f32 %v499, %v697
    %v762 = vadd.f32 %v500, %v698
    %v763 = vadd.f32 %v501, %v699
    %v764 = vadd.f32 %v502, %v700
    %v765 = vadd.f32 %v503, %v701
    %v766 = vadd.f32 %v504, %v702
    %v767 = vadd.f32 %v505, %v703
    %v768 = vadd.f32 %v506, %v704
    %v769 = vadd.f32 %v507, %v705
    %v770 = vadd.f32 %v508, %v706
    %v771 = vadd.f32 %v509, %v707
    %v772 = vadd.f32 %v510, %v708
    %v773 = vadd.f32 %v511, %v709
    %v774 = vadd.f32 %v512, %v710
    %v775 = vadd.f32 %v513, %v711
    %v776 = vadd.f32 %v514, %v712
    %v777 = vadd.f32 %v515, %v713
    %v778 = vadd.f32 %v516, %v714
    %v779 = vadd.f32 %v517, %v715
    %v780 = vadd.f32 %v518, %v716
    %v781 = vadd.f32 %v519, %v717
    %v782 = vadd.f32 %v520, %v718
    %v783 = vadd.f32 %v521, %v719
    %v784 = vadd.f32 %v522, %v720
    %v785 = vadd.f32 %v523, %v721
    %v786 = vadd.f32 %v524, %v722
    %v787 = vadd.f32 %v525, %v723
    %v788 = vadd.f32 %v526, %v724
    %v789 = vadd.f32 %v527, %v725
    %v790 = vadd.f32 %v528, %v726
    %v791 = vadd.f32 %v529, %v727
    %v792 = vadd.f32 %v530, %v728
    %v793 = vadd.f32 %v531, %v729
    %v794 = vadd.f32 %v532, %v730
    %v795 = vadd.f32 %v533, %v731
    %v796 = vadd.f32 %v534, %v732
    %v797 = vadd.f32 %v535, %v733
    %v798 = vadd.f32 %v536, %v734
    %v799 = vadd.f32 %v537, %v735
    %v800 = vadd.f32 %v538, %v736
    %v801 = vadd.f32 %v539, %v737
    %v802 = vadd.f32 %v540, %v738
    %v803 = vadd.f32 %v541, %v739
    %v804 = vadd.f32 %v542, %v740
    %v805 = vadd.f32 %v543, %v741
    %v806 = vadd.f32 %v544, %v742
    %v807 = vadd.f32 %v545, %v743
    %v808 = vadd.f32 %v546, %v744
    %v809 = vadd.f32 %v547, %v745
    %810 = vset.pattern.permute.xlu0 2
    %811 = vperm.xlu0 %810, %v29
    %v812 = vpop.permute.xlu0 %811
    %814 = vset.pattern.permute.xlu0 2
    %815 = vperm.xlu0 %814, %v30
    %v816 = vpop.permute.xlu0 %815
    %818 = vset.pattern.permute.xlu0 2
    %819 = vperm.xlu0 %818, %v31
    %v820 = vpop.permute.xlu0 %819
    %822 = vset.pattern.permute.xlu0 2
    %823 = vperm.xlu0 %822, %v32
    %v824 = vpop.permute.xlu0 %823
    %826 = vset.pattern.permute.xlu0 2
    %827 = vperm.xlu0 %826, %v33
    %v828 = vpop.permute.xlu0 %827
    %830 = vset.pattern.permute.xlu0 2
    %831 = vperm.xlu0 %830, %v34
    %v832 = vpop.permute.xlu0 %831
    %834 = vset.pattern.permute.xlu0 2
    %835 = vperm.xlu0 %834, %v35
    %v836 = vpop.permute.xlu0 %835
    %838 = vset.pattern.permute.xlu0 2
    %839 = vperm.xlu0 %838, %v36
    %v840 = vpop.permute.xlu0 %839
    %842 = vset.pattern.permute.xlu0 2
    %843 = vperm.xlu0 %842, %v37
    %v844 = vpop.permute.xlu0 %843
    %846 = vset.pattern.permute.xlu0 2
    %847 = vperm.xlu0 %846, %v38
    %v848 = vpop.permute.xlu0 %847
    %850 = vset.pattern.permute.xlu0 2
    %851 = vperm.xlu0 %850, %v39
    %v852 = vpop.permute.xlu0 %851
    %854 = vset.pattern.permute.xlu0 2
    %855 = vperm.xlu0 %854, %v40
    %v856 = vpop.permute.xlu0 %855
    %858 = vset.pattern.permute.xlu0 2
    %859 = vperm.xlu0 %858, %v41
    %v860 = vpop.permute.xlu0 %859
    %862 = vset.pattern.permute.xlu0 2
    %863 = vperm.xlu0 %862, %v42
    %v864 = vpop.permute.xlu0 %863
    %866 = vset.pattern.permute.xlu0 2
    %867 = vperm.xlu0 %866, %v43
    %v868 = vpop.permute.xlu0 %867
    %870 = vset.pattern.permute.xlu0 2
    %871 = vperm.xlu0 %870, %v44
    %v872 = vpop.permute.xlu0 %871
    %874 = vset.pattern.permute.xlu0 2
    %875 = vperm.xlu0 %874, %v45
    %v876 = vpop.permute.xlu0 %875
    %878 = vset.pattern.permute.xlu0 2
    %879 = vperm.xlu0 %878, %v46
    %v880 = vpop.permute.xlu0 %879
    %882 = vset.pattern.permute.xlu0 2
    %883 = vperm.xlu0 %882, %v47
    %v884 = vpop.permute.xlu0 %883
    %886 = vset.pattern.permute.xlu0 2
    %887 = vperm.xlu0 %886, %v48
    %v888 = vpop.permute.xlu0 %887
    %890 = vset.pattern.permute.xlu0 2
    %891 = vperm.xlu0 %890, %v49
    %v892 = vpop.permute.xlu0 %891
    %894 = vset.pattern.permute.xlu0 2
    %895 = vperm.xlu0 %894, %v50
    %v896 = vpop.permute.xlu0 %895
    %898 = vset.pattern.permute.xlu0 2
    %899 = vperm.xlu0 %898, %v51
    %v900 = vpop.permute.xlu0 %899
    %902 = vset.pattern.permute.xlu0 2
    %903 = vperm.xlu0 %902, %v52
    %v904 = vpop.permute.xlu0 %903
    %906 = vset.pattern.permute.xlu0 2
    %907 = vperm.xlu0 %906, %v53
    %v908 = vpop.permute.xlu0 %907
    %910 = vset.pattern.permute.xlu0 2
    %911 = vperm.xlu0 %910, %v54
    %v912 = vpop.permute.xlu0 %911
    %914 = vset.pattern.permute.xlu0 2
    %915 = vperm.xlu0 %914, %v55
    %v916 = vpop.permute.xlu0 %915
    %918 = vset.pattern.permute.xlu0 2
    %919 = vperm.xlu0 %918, %v56
    %v920 = vpop.permute.xlu0 %919
    %922 = vset.pattern.permute.xlu0 2
    %923 = vperm.xlu0 %922, %v57
    %v924 = vpop.permute.xlu0 %923
    %926 = vset.pattern.permute.xlu0 2
    %927 = vperm.xlu0 %926, %v58
    %v928 = vpop.permute.xlu0 %927
    %930 = vset.pattern.permute.xlu0 2
    %931 = vperm.xlu0 %930, %v59
    %v932 = vpop.permute.xlu0 %931
    %934 = vset.pattern.permute.xlu0 2
    %935 = vperm.xlu0 %934, %v60
    %v936 = vpop.permute.xlu0 %935
    %v938 = vperm.slane %v28, 2
    %v939 = vperm.slane %v28, 6
    %v942 = vperm.slane %v938, 2
    %v943 = vperm.slane %v939, 2
    %v944 = vmul.f32 %v812, %v942
    %v945 = vmul.f32 %v812, %v943
    %v946 = vmul.f32 %v816, %v942
    %v947 = vmul.f32 %v816, %v943
    %v948 = vmul.f32 %v820, %v942
    %v949 = vmul.f32 %v820, %v943
    %v950 = vmul.f32 %v824, %v942
    %v951 = vmul.f32 %v824, %v943
    %v952 = vmul.f32 %v828, %v942
    %v953 = vmul.f32 %v828, %v943
    %v954 = vmul.f32 %v832, %v942
    %v955 = vmul.f32 %v832, %v943
    %v956 = vmul.f32 %v836, %v942
    %v957 = vmul.f32 %v836, %v943
    %v958 = vmul.f32 %v840, %v942
    %v959 = vmul.f32 %v840, %v943
    %v960 = vmul.f32 %v844, %v942
    %v961 = vmul.f32 %v844, %v943
    %v962 = vmul.f32 %v848, %v942
    %v963 = vmul.f32 %v848, %v943
    %v964 = vmul.f32 %v852, %v942
    %v965 = vmul.f32 %v852, %v943
    %v966 = vmul.f32 %v856, %v942
    %v967 = vmul.f32 %v856, %v943
    %v968 = vmul.f32 %v860, %v942
    %v969 = vmul.f32 %v860, %v943
    %v970 = vmul.f32 %v864, %v942
    %v971 = vmul.f32 %v864, %v943
    %v972 = vmul.f32 %v868, %v942
    %v973 = vmul.f32 %v868, %v943
    %v974 = vmul.f32 %v872, %v942
    %v975 = vmul.f32 %v872, %v943
    %v976 = vmul.f32 %v876, %v942
    %v977 = vmul.f32 %v876, %v943
    %v978 = vmul.f32 %v880, %v942
    %v979 = vmul.f32 %v880, %v943
    %v980 = vmul.f32 %v884, %v942
    %v981 = vmul.f32 %v884, %v943
    %v982 = vmul.f32 %v888, %v942
    %v983 = vmul.f32 %v888, %v943
    %v984 = vmul.f32 %v892, %v942
    %v985 = vmul.f32 %v892, %v943
    %v986 = vmul.f32 %v896, %v942
    %v987 = vmul.f32 %v896, %v943
    %v988 = vmul.f32 %v900, %v942
    %v989 = vmul.f32 %v900, %v943
    %v990 = vmul.f32 %v904, %v942
    %v991 = vmul.f32 %v904, %v943
    %v992 = vmul.f32 %v908, %v942
    %v993 = vmul.f32 %v908, %v943
    %v994 = vmul.f32 %v912, %v942
    %v995 = vmul.f32 %v912, %v943
    %v996 = vmul.f32 %v916, %v942
    %v997 = vmul.f32 %v916, %v943
    %v998 = vmul.f32 %v920, %v942
    %v999 = vmul.f32 %v920, %v943
    %v1000 = vmul.f32 %v924, %v942
    %v1001 = vmul.f32 %v924, %v943
    %v1002 = vmul.f32 %v928, %v942
    %v1003 = vmul.f32 %v928, %v943
    %v1004 = vmul.f32 %v932, %v942
    %v1005 = vmul.f32 %v932, %v943
    %v1006 = vmul.f32 %v936, %v942
    %v1007 = vmul.f32 %v936, %v943
    %v1008 = vadd.f32 %v746, %v944
    %v1009 = vadd.f32 %v747, %v945
    %v1010 = vadd.f32 %v748, %v946
    %v1011 = vadd.f32 %v749, %v947
    %v1012 = vadd.f32 %v750, %v948
    %v1013 = vadd.f32 %v751, %v949
    %v1014 = vadd.f32 %v752, %v950
    %v1015 = vadd.f32 %v753, %v951
    %v1016 = vadd.f32 %v754, %v952
    %v1017 = vadd.f32 %v755, %v953
    %v1018 = vadd.f32 %v756, %v954
    %v1019 = vadd.f32 %v757, %v955
    %v1020 = vadd.f32 %v758, %v956
    %v1021 = vadd.f32 %v759, %v957
    %v1022 = vadd.f32 %v760, %v958
    %v1023 = vadd.f32 %v761, %v959
    %v1024 = vadd.f32 %v762, %v960
    %v1025 = vadd.f32 %v763, %v961
    %v1026 = vadd.f32 %v764, %v962
    %v1027 = vadd.f32 %v765, %v963
    %v1028 = vadd.f32 %v766, %v964
    %v1029 = vadd.f32 %v767, %v965
    %v1030 = vadd.f32 %v768, %v966
    %v1031 = vadd.f32 %v769, %v967
    %v1032 = vadd.f32 %v770, %v968
    %v1033 = vadd.f32 %v771, %v969
    %v1034 = vadd.f32 %v772, %v970
    %v1035 = vadd.f32 %v773, %v971
    %v1036 = vadd.f32 %v774, %v972
    %v1037 = vadd.f32 %v775, %v973
    %v1038 = vadd.f32 %v776, %v974
    %v1039 = vadd.f32 %v777, %v975
    %v1040 = vadd.f32 %v778, %v976
    %v1041 = vadd.f32 %v779, %v977
    %v1042 = vadd.f32 %v780, %v978
    %v1043 = vadd.f32 %v781, %v979
    %v1044 = vadd.f32 %v782, %v980
    %v1045 = vadd.f32 %v783, %v981
    %v1046 = vadd.f32 %v784, %v982
    %v1047 = vadd.f32 %v785, %v983
    %v1048 = vadd.f32 %v786, %v984
    %v1049 = vadd.f32 %v787, %v985
    %v1050 = vadd.f32 %v788, %v986
    %v1051 = vadd.f32 %v789, %v987
    %v1052 = vadd.f32 %v790, %v988
    %v1053 = vadd.f32 %v791, %v989
    %v1054 = vadd.f32 %v792, %v990
    %v1055 = vadd.f32 %v793, %v991
    %v1056 = vadd.f32 %v794, %v992
    %v1057 = vadd.f32 %v795, %v993
    %v1058 = vadd.f32 %v796, %v994
    %v1059 = vadd.f32 %v797, %v995
    %v1060 = vadd.f32 %v798, %v996
    %v1061 = vadd.f32 %v799, %v997
    %v1062 = vadd.f32 %v800, %v998
    %v1063 = vadd.f32 %v801, %v999
    %v1064 = vadd.f32 %v802, %v1000
    %v1065 = vadd.f32 %v803, %v1001
    %v1066 = vadd.f32 %v804, %v1002
    %v1067 = vadd.f32 %v805, %v1003
    %v1068 = vadd.f32 %v806, %v1004
    %v1069 = vadd.f32 %v807, %v1005
    %v1070 = vadd.f32 %v808, %v1006
    %v1071 = vadd.f32 %v809, %v1007
    %1072 = vset.pattern.permute.xlu0 3
    %1073 = vperm.xlu0 %1072, %v29
    %v1074 = vpop.permute.xlu0 %1073
    %1076 = vset.pattern.permute.xlu0 3
    %1077 = vperm.xlu0 %1076, %v30
    %v1078 = vpop.permute.xlu0 %1077
    %1080 = vset.pattern.permute.xlu0 3
    %1081 = vperm.xlu0 %1080, %v31
    %v1082 = vpop.permute.xlu0 %1081
    %1084 = vset.pattern.permute.xlu0 3
    %1085 = vperm.xlu0 %1084, %v32
    %v1086 = vpop.permute.xlu0 %1085
    %1088 = vset.pattern.permute.xlu0 3
    %1089 = vperm.xlu0 %1088, %v33
    %v1090 = vpop.permute.xlu0 %1089
    %1092 = vset.pattern.permute.xlu0 3
    %1093 = vperm.xlu0 %1092, %v34
    %v1094 = vpop.permute.xlu0 %1093
    %1096 = vset.pattern.permute.xlu0 3
    %1097 = vperm.xlu0 %1096, %v35
    %v1098 = vpop.permute.xlu0 %1097
    %1100 = vset.pattern.permute.xlu0 3
    %1101 = vperm.xlu0 %1100, %v36
    %v1102 = vpop.permute.xlu0 %1101
    %1104 = vset.pattern.permute.xlu0 3
    %1105 = vperm.xlu0 %1104, %v37
    %v1106 = vpop.permute.xlu0 %1105
    %1108 = vset.pattern.permute.xlu0 3
    %1109 = vperm.xlu0 %1108, %v38
    %v1110 = vpop.permute.xlu0 %1109
    %1112 = vset.pattern.permute.xlu0 3
    %1113 = vperm.xlu0 %1112, %v39
    %v1114 = vpop.permute.xlu0 %1113
    %1116 = vset.pattern.permute.xlu0 3
    %1117 = vperm.xlu0 %1116, %v40
    %v1118 = vpop.permute.xlu0 %1117
    %1120 = vset.pattern.permute.xlu0 3
    %1121 = vperm.xlu0 %1120, %v41
    %v1122 = vpop.permute.xlu0 %1121
    %1124 = vset.pattern.permute.xlu0 3
    %1125 = vperm.xlu0 %1124, %v42
    %v1126 = vpop.permute.xlu0 %1125
    %1128 = vset.pattern.permute.xlu0 3
    %1129 = vperm.xlu0 %1128, %v43
    %v1130 = vpop.permute.xlu0 %1129
    %1132 = vset.pattern.permute.xlu0 3
    %1133 = vperm.xlu0 %1132, %v44
    %v1134 = vpop.permute.xlu0 %1133
    %1136 = vset.pattern.permute.xlu0 3
    %1137 = vperm.xlu0 %1136, %v45
    %v1138 = vpop.permute.xlu0 %1137
    %1140 = vset.pattern.permute.xlu0 3
    %1141 = vperm.xlu0 %1140, %v46
    %v1142 = vpop.permute.xlu0 %1141
    %1144 = vset.pattern.permute.xlu0 3
    %1145 = vperm.xlu0 %1144, %v47
    %v1146 = vpop.permute.xlu0 %1145
    %1148 = vset.pattern.permute.xlu0 3
    %1149 = vperm.xlu0 %1148, %v48
    %v1150 = vpop.permute.xlu0 %1149
    %1152 = vset.pattern.permute.xlu0 3
    %1153 = vperm.xlu0 %1152, %v49
    %v1154 = vpop.permute.xlu0 %1153
    %1156 = vset.pattern.permute.xlu0 3
    %1157 = vperm.xlu0 %1156, %v50
    %v1158 = vpop.permute.xlu0 %1157
    %1160 = vset.pattern.permute.xlu0 3
    %1161 = vperm.xlu0 %1160, %v51
    %v1162 = vpop.permute.xlu0 %1161
    %1164 = vset.pattern.permute.xlu0 3
    %1165 = vperm.xlu0 %1164, %v52
    %v1166 = vpop.permute.xlu0 %1165
    %1168 = vset.pattern.permute.xlu0 3
    %1169 = vperm.xlu0 %1168, %v53
    %v1170 = vpop.permute.xlu0 %1169
    %1172 = vset.pattern.permute.xlu0 3
    %1173 = vperm.xlu0 %1172, %v54
    %v1174 = vpop.permute.xlu0 %1173
    %1176 = vset.pattern.permute.xlu0 3
    %1177 = vperm.xlu0 %1176, %v55
    %v1178 = vpop.permute.xlu0 %1177
    %1180 = vset.pattern.permute.xlu0 3
    %1181 = vperm.xlu0 %1180, %v56
    %v1182 = vpop.permute.xlu0 %1181
    %1184 = vset.pattern.permute.xlu0 3
    %1185 = vperm.xlu0 %1184, %v57
    %v1186 = vpop.permute.xlu0 %1185
    %1188 = vset.pattern.permute.xlu0 3
    %1189 = vperm.xlu0 %1188, %v58
    %v1190 = vpop.permute.xlu0 %1189
    %1192 = vset.pattern.permute.xlu0 3
    %1193 = vperm.xlu0 %1192, %v59
    %v1194 = vpop.permute.xlu0 %1193
    %1196 = vset.pattern.permute.xlu0 3
    %1197 = vperm.xlu0 %1196, %v60
    %v1198 = vpop.permute.xlu0 %1197
    %v1200 = vperm.slane %v28, 3
    %v1201 = vperm.slane %v28, 7
    %v1204 = vperm.slane %v1200, 3
    %v1205 = vperm.slane %v1201, 3
    %v1206 = vmul.f32 %v1074, %v1204
    %v1207 = vmul.f32 %v1074, %v1205
    %v1208 = vmul.f32 %v1078, %v1204
    %v1209 = vmul.f32 %v1078, %v1205
    %v1210 = vmul.f32 %v1082, %v1204
    %v1211 = vmul.f32 %v1082, %v1205
    %v1212 = vmul.f32 %v1086, %v1204
    %v1213 = vmul.f32 %v1086, %v1205
    %v1214 = vmul.f32 %v1090, %v1204
    %v1215 = vmul.f32 %v1090, %v1205
    %v1216 = vmul.f32 %v1094, %v1204
    %v1217 = vmul.f32 %v1094, %v1205
    %v1218 = vmul.f32 %v1098, %v1204
    %v1219 = vmul.f32 %v1098, %v1205
    %v1220 = vmul.f32 %v1102, %v1204
    %v1221 = vmul.f32 %v1102, %v1205
    %v1222 = vmul.f32 %v1106, %v1204
    %v1223 = vmul.f32 %v1106, %v1205
    %v1224 = vmul.f32 %v1110, %v1204
    %v1225 = vmul.f32 %v1110, %v1205
    %v1226 = vmul.f32 %v1114, %v1204
    %v1227 = vmul.f32 %v1114, %v1205
    %v1228 = vmul.f32 %v1118, %v1204
    %v1229 = vmul.f32 %v1118, %v1205
    %v1230 = vmul.f32 %v1122, %v1204
    %v1231 = vmul.f32 %v1122, %v1205
    %v1232 = vmul.f32 %v1126, %v1204
    %v1233 = vmul.f32 %v1126, %v1205
    %v1234 = vmul.f32 %v1130, %v1204
    %v1235 = vmul.f32 %v1130, %v1205
    %v1236 = vmul.f32 %v1134, %v1204
    %v1237 = vmul.f32 %v1134, %v1205
    %v1238 = vmul.f32 %v1138, %v1204
    %v1239 = vmul.f32 %v1138, %v1205
    %v1240 = vmul.f32 %v1142, %v1204
    %v1241 = vmul.f32 %v1142, %v1205
    %v1242 = vmul.f32 %v1146, %v1204
    %v1243 = vmul.f32 %v1146, %v1205
    %v1244 = vmul.f32 %v1150, %v1204
    %v1245 = vmul.f32 %v1150, %v1205
    %v1246 = vmul.f32 %v1154, %v1204
    %v1247 = vmul.f32 %v1154, %v1205
    %v1248 = vmul.f32 %v1158, %v1204
    %v1249 = vmul.f32 %v1158, %v1205
    %v1250 = vmul.f32 %v1162, %v1204
    %v1251 = vmul.f32 %v1162, %v1205
    %v1252 = vmul.f32 %v1166, %v1204
    %v1253 = vmul.f32 %v1166, %v1205
    %v1254 = vmul.f32 %v1170, %v1204
    %v1255 = vmul.f32 %v1170, %v1205
    %v1256 = vmul.f32 %v1174, %v1204
    %v1257 = vmul.f32 %v1174, %v1205
    %v1258 = vmul.f32 %v1178, %v1204
    %v1259 = vmul.f32 %v1178, %v1205
    %v1260 = vmul.f32 %v1182, %v1204
    %v1261 = vmul.f32 %v1182, %v1205
    %v1262 = vmul.f32 %v1186, %v1204
    %v1263 = vmul.f32 %v1186, %v1205
    %v1264 = vmul.f32 %v1190, %v1204
    %v1265 = vmul.f32 %v1190, %v1205
    %v1266 = vmul.f32 %v1194, %v1204
    %v1267 = vmul.f32 %v1194, %v1205
    %v1268 = vmul.f32 %v1198, %v1204
    %v1269 = vmul.f32 %v1198, %v1205
    %v1270 = vadd.f32 %v1008, %v1206
    %v1271 = vadd.f32 %v1009, %v1207
    %v1272 = vadd.f32 %v1010, %v1208
    %v1273 = vadd.f32 %v1011, %v1209
    %v1274 = vadd.f32 %v1012, %v1210
    %v1275 = vadd.f32 %v1013, %v1211
    %v1276 = vadd.f32 %v1014, %v1212
    %v1277 = vadd.f32 %v1015, %v1213
    %v1278 = vadd.f32 %v1016, %v1214
    %v1279 = vadd.f32 %v1017, %v1215
    %v1280 = vadd.f32 %v1018, %v1216
    %v1281 = vadd.f32 %v1019, %v1217
    %v1282 = vadd.f32 %v1020, %v1218
    %v1283 = vadd.f32 %v1021, %v1219
    %v1284 = vadd.f32 %v1022, %v1220
    %v1285 = vadd.f32 %v1023, %v1221
    %v1286 = vadd.f32 %v1024, %v1222
    %v1287 = vadd.f32 %v1025, %v1223
    %v1288 = vadd.f32 %v1026, %v1224
    %v1289 = vadd.f32 %v1027, %v1225
    %v1290 = vadd.f32 %v1028, %v1226
    %v1291 = vadd.f32 %v1029, %v1227
    %v1292 = vadd.f32 %v1030, %v1228
    %v1293 = vadd.f32 %v1031, %v1229
    %v1294 = vadd.f32 %v1032, %v1230
    %v1295 = vadd.f32 %v1033, %v1231
    %v1296 = vadd.f32 %v1034, %v1232
    %v1297 = vadd.f32 %v1035, %v1233
    %v1298 = vadd.f32 %v1036, %v1234
    %v1299 = vadd.f32 %v1037, %v1235
    %v1300 = vadd.f32 %v1038, %v1236
    %v1301 = vadd.f32 %v1039, %v1237
    %v1302 = vadd.f32 %v1040, %v1238
    %v1303 = vadd.f32 %v1041, %v1239
    %v1304 = vadd.f32 %v1042, %v1240
    %v1305 = vadd.f32 %v1043, %v1241
    %v1306 = vadd.f32 %v1044, %v1242
    %v1307 = vadd.f32 %v1045, %v1243
    %v1308 = vadd.f32 %v1046, %v1244
    %v1309 = vadd.f32 %v1047, %v1245
    %v1310 = vadd.f32 %v1048, %v1246
    %v1311 = vadd.f32 %v1049, %v1247
    %v1312 = vadd.f32 %v1050, %v1248
    %v1313 = vadd.f32 %v1051, %v1249
    %v1314 = vadd.f32 %v1052, %v1250
    %v1315 = vadd.f32 %v1053, %v1251
    %v1316 = vadd.f32 %v1054, %v1252
    %v1317 = vadd.f32 %v1055, %v1253
    %v1318 = vadd.f32 %v1056, %v1254
    %v1319 = vadd.f32 %v1057, %v1255
    %v1320 = vadd.f32 %v1058, %v1256
    %v1321 = vadd.f32 %v1059, %v1257
    %v1322 = vadd.f32 %v1060, %v1258
    %v1323 = vadd.f32 %v1061, %v1259
    %v1324 = vadd.f32 %v1062, %v1260
    %v1325 = vadd.f32 %v1063, %v1261
    %v1326 = vadd.f32 %v1064, %v1262
    %v1327 = vadd.f32 %v1065, %v1263
    %v1328 = vadd.f32 %v1066, %v1264
    %v1329 = vadd.f32 %v1067, %v1265
    %v1330 = vadd.f32 %v1068, %v1266
    %v1331 = vadd.f32 %v1069, %v1267
    %v1332 = vadd.f32 %v1070, %v1268
    %v1333 = vadd.f32 %v1071, %v1269
    %v1334 = vmax.f32 %v1270, 0.0
    %v1335 = vmax.f32 %v1271, 0.0
    %v1336 = vmax.f32 %v1272, 0.0
    %v1337 = vmax.f32 %v1273, 0.0
    %v1338 = vmax.f32 %v1274, 0.0
    %v1339 = vmax.f32 %v1275, 0.0
    %v1340 = vmax.f32 %v1276, 0.0
    %v1341 = vmax.f32 %v1277, 0.0
    %v1342 = vmax.f32 %v1278, 0.0
    %v1343 = vmax.f32 %v1279, 0.0
    %v1344 = vmax.f32 %v1280, 0.0
    %v1345 = vmax.f32 %v1281, 0.0
    %v1346 = vmax.f32 %v1282, 0.0
    %v1347 = vmax.f32 %v1283, 0.0
    %v1348 = vmax.f32 %v1284, 0.0
    %v1349 = vmax.f32 %v1285, 0.0
    %v1350 = vmax.f32 %v1286, 0.0
    %v1351 = vmax.f32 %v1287, 0.0
    %v1352 = vmax.f32 %v1288, 0.0
    %v1353 = vmax.f32 %v1289, 0.0
    %v1354 = vmax.f32 %v1290, 0.0
    %v1355 = vmax.f32 %v1291, 0.0
    %v1356 = vmax.f32 %v1292, 0.0
    %v1357 = vmax.f32 %v1293, 0.0
    %v1358 = vmax.f32 %v1294, 0.0
    %v1359 = vmax.f32 %v1295, 0.0
    %v1360 = vmax.f32 %v1296, 0.0
    %v1361 = vmax.f32 %v1297, 0.0
    %v1362 = vmax.f32 %v1298, 0.0
    %v1363 = vmax.f32 %v1299, 0.0
    %v1364 = vmax.f32 %v1300, 0.0
    %v1365 = vmax.f32 %v1301, 0.0
    %v1366 = vmax.f32 %v1302, 0.0
    %v1367 = vmax.f32 %v1303, 0.0
    %v1368 = vmax.f32 %v1304, 0.0
    %v1369 = vmax.f32 %v1305, 0.0
    %v1370 = vmax.f32 %v1306, 0.0
    %v1371 = vmax.f32 %v1307, 0.0
    %v1372 = vmax.f32 %v1308, 0.0
    %v1373 = vmax.f32 %v1309, 0.0
    %v1374 = vmax.f32 %v1310, 0.0
    %v1375 = vmax.f32 %v1311, 0.0
    %v1376 = vmax.f32 %v1312, 0.0
    %v1377 = vmax.f32 %v1313, 0.0
    %v1378 = vmax.f32 %v1314, 0.0
    %v1379 = vmax.f32 %v1315, 0.0
    %v1380 = vmax.f32 %v1316, 0.0
    %v1381 = vmax.f32 %v1317, 0.0
    %v1382 = vmax.f32 %v1318, 0.0
    %v1383 = vmax.f32 %v1319, 0.0
    %v1384 = vmax.f32 %v1320, 0.0
    %v1385 = vmax.f32 %v1321, 0.0
    %v1386 = vmax.f32 %v1322, 0.0
    %v1387 = vmax.f32 %v1323, 0.0
    %v1388 = vmax.f32 %v1324, 0.0
    %v1389 = vmax.f32 %v1325, 0.0
    %v1390 = vmax.f32 %v1326, 0.0
    %v1391 = vmax.f32 %v1327, 0.0
    %v1392 = vmax.f32 %v1328, 0.0
    %v1393 = vmax.f32 %v1329, 0.0
    %v1394 = vmax.f32 %v1330, 0.0
    %v1395 = vmax.f32 %v1331, 0.0
    %v1396 = vmax.f32 %v1332, 0.0
    %v1397 = vmax.f32 %v1333, 0.0
    %v1398 = vld [vmem:[%s3] sm:$0xff]
    %v1399 = vld [vmem:[%s3 + $0x8] sm:$0xff]
    %v1400 = vld [vmem:[%s3 + $0x10] sm:$0xff]
    %v1401 = vld [vmem:[%s3 + $0x18] sm:$0xff]
    %v1402 = vld [vmem:[%s3 + $0x20] sm:$0xff]
    %v1403 = vld [vmem:[%s3 + $0x28] sm:$0xff]
    %v1404 = vld [vmem:[%s3 + $0x30] sm:$0xff]
    %v1405 = vld [vmem:[%s3 + $0x38] sm:$0xff]
    %v1406 = vld [vmem:[%s3 + $0x40] sm:$0xff]
    %v1407 = vld [vmem:[%s3 + $0x48] sm:$0xff]
    %v1408 = vld [vmem:[%s3 + $0x50] sm:$0xff]
    %v1409 = vld [vmem:[%s3 + $0x58] sm:$0xff]
    %v1410 = vld [vmem:[%s3 + $0x60] sm:$0xff]
    %v1411 = vld [vmem:[%s3 + $0x68] sm:$0xff]
    %v1412 = vld [vmem:[%s3 + $0x70] sm:$0xff]
    %v1413 = vld [vmem:[%s3 + $0x78] sm:$0xff]
    %v1414 = vld [vmem:[%s3 + $0x80] sm:$0xff]
    %v1415 = vld [vmem:[%s3 + $0x88] sm:$0xff]
    %v1416 = vld [vmem:[%s3 + $0x90] sm:$0xff]
    %v1417 = vld [vmem:[%s3 + $0x98] sm:$0xff]
    %v1418 = vld [vmem:[%s3 + $0xa0] sm:$0xff]
    %v1419 = vld [vmem:[%s3 + $0xa8] sm:$0xff]
    %v1420 = vld [vmem:[%s3 + $0xb0] sm:$0xff]
    %v1421 = vld [vmem:[%s3 + $0xb8] sm:$0xff]
    %v1422 = vld [vmem:[%s3 + $0xc0] sm:$0xff]
    %v1423 = vld [vmem:[%s3 + $0xc8] sm:$0xff]
    %v1424 = vld [vmem:[%s3 + $0xd0] sm:$0xff]
    %v1425 = vld [vmem:[%s3 + $0xd8] sm:$0xff]
    %v1426 = vld [vmem:[%s3 + $0xe0] sm:$0xff]
    %v1427 = vld [vmem:[%s3 + $0xe8] sm:$0xff]
    %v1428 = vld [vmem:[%s3 + $0xf0] sm:$0xff]
    %v1429 = vld [vmem:[%s3 + $0xf8] sm:$0xff]
    %v1430 = vld [vmem:[%s4] sm:$0xff]
    %v1431 = vld [vmem:[%s4 + $0x8] sm:$0xff]
    %v1432 = vld [vmem:[%s4 + $0x10] sm:$0xff]
    %v1433 = vld [vmem:[%s4 + $0x18] sm:$0xff]
    %v1434 = vld [vmem:[%s4 + $0x20] sm:$0xff]
    %v1435 = vld [vmem:[%s4 + $0x28] sm:$0xff]
    %v1436 = vld [vmem:[%s4 + $0x30] sm:$0xff]
    %v1437 = vld [vmem:[%s4 + $0x38] sm:$0xff]
    %v1438 = vld [vmem:[%s4 + $0x40] sm:$0xff]
    %v1439 = vld [vmem:[%s4 + $0x48] sm:$0xff]
    %v1440 = vld [vmem:[%s4 + $0x50] sm:$0xff]
    %v1441 = vld [vmem:[%s4 + $0x58] sm:$0xff]
    %v1442 = vld [vmem:[%s4 + $0x60] sm:$0xff]
    %v1443 = vld [vmem:[%s4 + $0x68] sm:$0xff]
    %v1444 = vld [vmem:[%s4 + $0x70] sm:$0xff]
    %v1445 = vld [vmem:[%s4 + $0x78] sm:$0xff]
    %1447 = vset.pattern.permute.xlu0 0
    %1448 = vperm.xlu0 %1447, %v1430
    %v1449 = vpop.permute.xlu0 %1448
    %1452 = vset.pattern.permute.xlu0 0
    %1453 = vperm.xlu0 %1452, %v1431
    %v1454 = vpop.permute.xlu0 %1453
    %1457 = vset.pattern.permute.xlu0 0
    %1458 = vperm.xlu0 %1457, %v1432
    %v1459 = vpop.permute.xlu0 %1458
    %1462 = vset.pattern.permute.xlu0 0
    %1463 = vperm.xlu0 %1462, %v1433
    %v1464 = vpop.permute.xlu0 %1463
    %1467 = vset.pattern.permute.xlu0 0
    %1468 = vperm.xlu0 %1467, %v1434
    %v1469 = vpop.permute.xlu0 %1468
    %1472 = vset.pattern.permute.xlu0 0
    %1473 = vperm.xlu0 %1472, %v1435
    %v1474 = vpop.permute.xlu0 %1473
    %1477 = vset.pattern.permute.xlu0 0
    %1478 = vperm.xlu0 %1477, %v1436
    %v1479 = vpop.permute.xlu0 %1478
    %1482 = vset.pattern.permute.xlu0 0
    %1483 = vperm.xlu0 %1482, %v1437
    %v1484 = vpop.permute.xlu0 %1483
    %1487 = vset.pattern.permute.xlu0 0
    %1488 = vperm.xlu0 %1487, %v1438
    %v1489 = vpop.permute.xlu0 %1488
    %1492 = vset.pattern.permute.xlu0 0
    %1493 = vperm.xlu0 %1492, %v1439
    %v1494 = vpop.permute.xlu0 %1493
    %1497 = vset.pattern.permute.xlu0 0
    %1498 = vperm.xlu0 %1497, %v1440
    %v1499 = vpop.permute.xlu0 %1498
    %1502 = vset.pattern.permute.xlu0 0
    %1503 = vperm.xlu0 %1502, %v1441
    %v1504 = vpop.permute.xlu0 %1503
    %1507 = vset.pattern.permute.xlu0 0
    %1508 = vperm.xlu0 %1507, %v1442
    %v1509 = vpop.permute.xlu0 %1508
    %1512 = vset.pattern.permute.xlu0 0
    %1513 = vperm.xlu0 %1512, %v1443
    %v1514 = vpop.permute.xlu0 %1513
    %1517 = vset.pattern.permute.xlu0 0
    %1518 = vperm.xlu0 %1517, %v1444
    %v1519 = vpop.permute.xlu0 %1518
    %1522 = vset.pattern.permute.xlu0 0
    %1523 = vperm.xlu0 %1522, %v1445
    %v1524 = vpop.permute.xlu0 %1523
    %1526 = vmatpush.msra.mxu0 %v1364
    %1527 = vmatpush.msra.mxu0 %v1362
    %1528 = vmatpush.msra.mxu0 %v1360
    %1529 = vmatpush.msra.mxu0 %v1358
    %1530 = vmatpush.msra.mxu0 %v1356
    %1531 = vmatpush.msra.mxu0 %v1354
    %1532 = vmatpush.msra.mxu0 %v1352
    %1533 = vmatpush.msra.mxu0 %v1350
    %1534 = vmatpush.msra.mxu0 %v1348
    %1535 = vmatpush.msra.mxu0 %v1346
    %1536 = vmatpush.msra.mxu0 %v1344
    %1537 = vmatpush.msra.mxu0 %v1342
    %1538 = vmatpush.msra.mxu0 %v1340
    %1539 = vmatpush.msra.mxu0 %v1338
    %1540 = vmatpush.msra.mxu0 %v1336
    %1541 = vmatpush.msra.mxu0 %v1334
    %1542 = vmatmul.f32.gmra.mxu0 %v1398
    %v1543 = vpop.f32.mrf.mxu0
    %v1544 = vadd.f32 %v1449, %v1543
    %1545 = vmatmul.f32.gmra.mxu0 %v1400
    %v1546 = vpop.f32.mrf.mxu0
    %v1547 = vadd.f32 %v1454, %v1546
    %1548 = vmatmul.f32.gmra.mxu0 %v1402
    %v1549 = vpop.f32.mrf.mxu0
    %v1550 = vadd.f32 %v1459, %v1549
    %1551 = vmatmul.f32.gmra.mxu0 %v1404
    %v1552 = vpop.f32.mrf.mxu0
    %v1553 = vadd.f32 %v1464, %v1552
    %1554 = vmatmul.f32.gmra.mxu0 %v1406
    %v1555 = vpop.f32.mrf.mxu0
    %v1556 = vadd.f32 %v1469, %v1555
    %1557 = vmatmul.f32.gmra.mxu0 %v1408
    %v1558 = vpop.f32.mrf.mxu0
    %v1559 = vadd.f32 %v1474, %v1558
    %1560 = vmatmul.f32.gmra.mxu0 %v1410
    %v1561 = vpop.f32.mrf.mxu0
    %v1562 = vadd.f32 %v1479, %v1561
    %1563 = vmatmul.f32.gmra.mxu0 %v1412
    %v1564 = vpop.f32.mrf.mxu0
    %v1565 = vadd.f32 %v1484, %v1564
    %1566 = vmatmul.f32.gmra.mxu0 %v1414
    %v1567 = vpop.f32.mrf.mxu0
    %v1568 = vadd.f32 %v1489, %v1567
    %1569 = vmatmul.f32.gmra.mxu0 %v1416
    %v1570 = vpop.f32.mrf.mxu0
    %v1571 = vadd.f32 %v1494, %v1570
    %1572 = vmatmul.f32.gmra.mxu0 %v1418
    %v1573 = vpop.f32.mrf.mxu0
    %v1574 = vadd.f32 %v1499, %v1573
    %1575 = vmatmul.f32.gmra.mxu0 %v1420
    %v1576 = vpop.f32.mrf.mxu0
    %v1577 = vadd.f32 %v1504, %v1576
    %1578 = vmatmul.f32.gmra.mxu0 %v1422
    %v1579 = vpop.f32.mrf.mxu0
    %v1580 = vadd.f32 %v1509, %v1579
    %1581 = vmatmul.f32.gmra.mxu0 %v1424
    %v1582 = vpop.f32.mrf.mxu0
    %v1583 = vadd.f32 %v1514, %v1582
    %1584 = vmatmul.f32.gmra.mxu0 %v1426
    %v1585 = vpop.f32.mrf.mxu0
    %v1586 = vadd.f32 %v1519, %v1585
    %1587 = vmatmul.f32.gmra.mxu0 %v1428
    %v1588 = vpop.f32.mrf.mxu0
    %v1589 = vadd.f32 %v1524, %v1588
    %1590 = vdwg.mxu0
    %1591 = vmatpush.msra.mxu0 %v1396
    %1592 = vmatpush.msra.mxu0 %v1394
    %1593 = vmatpush.msra.mxu0 %v1392
    %1594 = vmatpush.msra.mxu0 %v1390
    %1595 = vmatpush.msra.mxu0 %v1388
    %1596 = vmatpush.msra.mxu0 %v1386
    %1597 = vmatpush.msra.mxu0 %v1384
    %1598 = vmatpush.msra.mxu0 %v1382
    %1599 = vmatpush.msra.mxu0 %v1380
    %1600 = vmatpush.msra.mxu0 %v1378
    %1601 = vmatpush.msra.mxu0 %v1376
    %1602 = vmatpush.msra.mxu0 %v1374
    %1603 = vmatpush.msra.mxu0 %v1372
    %1604 = vmatpush.msra.mxu0 %v1370
    %1605 = vmatpush.msra.mxu0 %v1368
    %1606 = vmatpush.msra.mxu0 %v1366
    %1607 = vmatmul.f32.gmra.mxu0 %v1399
    %v1608 = vpop.f32.mrf.mxu0
    %v1609 = vadd.f32 %v1544, %v1608
    %1610 = vmatmul.f32.gmra.mxu0 %v1401
    %v1611 = vpop.f32.mrf.mxu0
    %v1612 = vadd.f32 %v1547, %v1611
    %1613 = vmatmul.f32.gmra.mxu0 %v1403
    %v1614 = vpop.f32.mrf.mxu0
    %v1615 = vadd.f32 %v1550, %v1614
    %1616 = vmatmul.f32.gmra.mxu0 %v1405
    %v1617 = vpop.f32.mrf.mxu0
    %v1618 = vadd.f32 %v1553, %v1617
    %1619 = vmatmul.f32.gmra.mxu0 %v1407
    %v1620 = vpop.f32.mrf.mxu0
    %v1621 = vadd.f32 %v1556, %v1620
    %1622 = vmatmul.f32.gmra.mxu0 %v1409
    %v1623 = vpop.f32.mrf.mxu0
    %v1624 = vadd.f32 %v1559, %v1623
    %1625 = vmatmul.f32.gmra.mxu0 %v1411
    %v1626 = vpop.f32.mrf.mxu0
    %v1627 = vadd.f32 %v1562, %v1626
    %1628 = vmatmul.f32.gmra.mxu0 %v1413
    %v1629 = vpop.f32.mrf.mxu0
    %v1630 = vadd.f32 %v1565, %v1629
    %1631 = vmatmul.f32.gmra.mxu0 %v1415
    %v1632 = vpop.f32.mrf.mxu0
    %v1633 = vadd.f32 %v1568, %v1632
    %1634 = vmatmul.f32.gmra.mxu0 %v1417
    %v1635 = vpop.f32.mrf.mxu0
    %v1636 = vadd.f32 %v1571, %v1635
    %1637 = vmatmul.f32.gmra.mxu0 %v1419
    %v1638 = vpop.f32.mrf.mxu0
    %v1639 = vadd.f32 %v1574, %v1638
    %1640 = vmatmul.f32.gmra.mxu0 %v1421
    %v1641 = vpop.f32.mrf.mxu0
    %v1642 = vadd.f32 %v1577, %v1641
    %1643 = vmatmul.f32.gmra.mxu0 %v1423
    %v1644 = vpop.f32.mrf.mxu0
    %v1645 = vadd.f32 %v1580, %v1644
    %1646 = vmatmul.f32.gmra.mxu0 %v1425
    %v1647 = vpop.f32.mrf.mxu0
    %v1648 = vadd.f32 %v1583, %v1647
    %1649 = vmatmul.f32.gmra.mxu0 %v1427
    %v1650 = vpop.f32.mrf.mxu0
    %v1651 = vadd.f32 %v1586, %v1650
    %1652 = vmatmul.f32.gmra.mxu0 %v1429
    %v1653 = vpop.f32.mrf.mxu0
    %v1654 = vadd.f32 %v1589, %v1653
    %1655 = vdwg.mxu0
    %1656 = vmatpush.msra.mxu0 %v1365
    %1657 = vmatpush.msra.mxu0 %v1363
    %1658 = vmatpush.msra.mxu0 %v1361
    %1659 = vmatpush.msra.mxu0 %v1359
    %1660 = vmatpush.msra.mxu0 %v1357
    %1661 = vmatpush.msra.mxu0 %v1355
    %1662 = vmatpush.msra.mxu0 %v1353
    %1663 = vmatpush.msra.mxu0 %v1351
    %1664 = vmatpush.msra.mxu0 %v1349
    %1665 = vmatpush.msra.mxu0 %v1347
    %1666 = vmatpush.msra.mxu0 %v1345
    %1667 = vmatpush.msra.mxu0 %v1343
    %1668 = vmatpush.msra.mxu0 %v1341
    %1669 = vmatpush.msra.mxu0 %v1339
    %1670 = vmatpush.msra.mxu0 %v1337
    %1671 = vmatpush.msra.mxu0 %v1335
    %1672 = vmatmul.f32.gmra.mxu0 %v1398
    %v1673 = vpop.f32.mrf.mxu0
    %v1674 = vadd.f32 %v1449, %v1673
    %1675 = vmatmul.f32.gmra.mxu0 %v1400
    %v1676 = vpop.f32.mrf.mxu0
    %v1677 = vadd.f32 %v1454, %v1676
    %1678 = vmatmul.f32.gmra.mxu0 %v1402
    %v1679 = vpop.f32.mrf.mxu0
    %v1680 = vadd.f32 %v1459, %v1679
    %1681 = vmatmul.f32.gmra.mxu0 %v1404
    %v1682 = vpop.f32.mrf.mxu0
    %v1683 = vadd.f32 %v1464, %v1682
    %1684 = vmatmul.f32.gmra.mxu0 %v1406
    %v1685 = vpop.f32.mrf.mxu0
    %v1686 = vadd.f32 %v1469, %v1685
    %1687 = vmatmul.f32.gmra.mxu0 %v1408
    %v1688 = vpop.f32.mrf.mxu0
    %v1689 = vadd.f32 %v1474, %v1688
    %1690 = vmatmul.f32.gmra.mxu0 %v1410
    %v1691 = vpop.f32.mrf.mxu0
    %v1692 = vadd.f32 %v1479, %v1691
    %1693 = vmatmul.f32.gmra.mxu0 %v1412
    %v1694 = vpop.f32.mrf.mxu0
    %v1695 = vadd.f32 %v1484, %v1694
    %1696 = vmatmul.f32.gmra.mxu0 %v1414
    %v1697 = vpop.f32.mrf.mxu0
    %v1698 = vadd.f32 %v1489, %v1697
    %1699 = vmatmul.f32.gmra.mxu0 %v1416
    %v1700 = vpop.f32.mrf.mxu0
    %v1701 = vadd.f32 %v1494, %v1700
    %1702 = vmatmul.f32.gmra.mxu0 %v1418
    %v1703 = vpop.f32.mrf.mxu0
    %v1704 = vadd.f32 %v1499, %v1703
    %1705 = vmatmul.f32.gmra.mxu0 %v1420
    %v1706 = vpop.f32.mrf.mxu0
    %v1707 = vadd.f32 %v1504, %v1706
    %1708 = vmatmul.f32.gmra.mxu0 %v1422
    %v1709 = vpop.f32.mrf.mxu0
    %v1710 = vadd.f32 %v1509, %v1709
    %1711 = vmatmul.f32.gmra.mxu0 %v1424
    %v1712 = vpop.f32.mrf.mxu0
    %v1713 = vadd.f32 %v1514, %v1712
    %1714 = vmatmul.f32.gmra.mxu0 %v1426
    %v1715 = vpop.f32.mrf.mxu0
    %v1716 = vadd.f32 %v1519, %v1715
    %1717 = vmatmul.f32.gmra.mxu0 %v1428
    %v1718 = vpop.f32.mrf.mxu0
    %v1719 = vadd.f32 %v1524, %v1718
    %1720 = vdwg.mxu0
    %1721 = vmatpush.msra.mxu0 %v1397
    %1722 = vmatpush.msra.mxu0 %v1395
    %1723 = vmatpush.msra.mxu0 %v1393
    %1724 = vmatpush.msra.mxu0 %v1391
    %1725 = vmatpush.msra.mxu0 %v1389
    %1726 = vmatpush.msra.mxu0 %v1387
    %1727 = vmatpush.msra.mxu0 %v1385
    %1728 = vmatpush.msra.mxu0 %v1383
    %1729 = vmatpush.msra.mxu0 %v1381
    %1730 = vmatpush.msra.mxu0 %v1379
    %1731 = vmatpush.msra.mxu0 %v1377
    %1732 = vmatpush.msra.mxu0 %v1375
    %1733 = vmatpush.msra.mxu0 %v1373
    %1734 = vmatpush.msra.mxu0 %v1371
    %1735 = vmatpush.msra.mxu0 %v1369
    %1736 = vmatpush.msra.mxu0 %v1367
    %1737 = vmatmul.f32.gmra.mxu0 %v1399
    %v1738 = vpop.f32.mrf.mxu0
    %v1739 = vadd.f32 %v1674, %v1738
    %1740 = vmatmul.f32.gmra.mxu0 %v1401
    %v1741 = vpop.f32.mrf.mxu0
    %v1742 = vadd.f32 %v1677, %v1741
    %1743 = vmatmul.f32.gmra.mxu0 %v1403
    %v1744 = vpop.f32.mrf.mxu0
    %v1745 = vadd.f32 %v1680, %v1744
    %1746 = vmatmul.f32.gmra.mxu0 %v1405
    %v1747 = vpop.f32.mrf.mxu0
    %v1748 = vadd.f32 %v1683, %v1747
    %1749 = vmatmul.f32.gmra.mxu0 %v1407
    %v1750 = vpop.f32.mrf.mxu0
    %v1751 = vadd.f32 %v1686, %v1750
    %1752 = vmatmul.f32.gmra.mxu0 %v1409
    %v1753 = vpop.f32.mrf.mxu0
    %v1754 = vadd.f32 %v1689, %v1753
    %1755 = vmatmul.f32.gmra.mxu0 %v1411
    %v1756 = vpop.f32.mrf.mxu0
    %v1757 = vadd.f32 %v1692, %v1756
    %1758 = vmatmul.f32.gmra.mxu0 %v1413
    %v1759 = vpop.f32.mrf.mxu0
    %v1760 = vadd.f32 %v1695, %v1759
    %1761 = vmatmul.f32.gmra.mxu0 %v1415
    %v1762 = vpop.f32.mrf.mxu0
    %v1763 = vadd.f32 %v1698, %v1762
    %1764 = vmatmul.f32.gmra.mxu0 %v1417
    %v1765 = vpop.f32.mrf.mxu0
    %v1766 = vadd.f32 %v1701, %v1765
    %1767 = vmatmul.f32.gmra.mxu0 %v1419
    %v1768 = vpop.f32.mrf.mxu0
    %v1769 = vadd.f32 %v1704, %v1768
    %1770 = vmatmul.f32.gmra.mxu0 %v1421
    %v1771 = vpop.f32.mrf.mxu0
    %v1772 = vadd.f32 %v1707, %v1771
    %1773 = vmatmul.f32.gmra.mxu0 %v1423
    %v1774 = vpop.f32.mrf.mxu0
    %v1775 = vadd.f32 %v1710, %v1774
    %1776 = vmatmul.f32.gmra.mxu0 %v1425
    %v1777 = vpop.f32.mrf.mxu0
    %v1778 = vadd.f32 %v1713, %v1777
    %1779 = vmatmul.f32.gmra.mxu0 %v1427
    %v1780 = vpop.f32.mrf.mxu0
    %v1781 = vadd.f32 %v1716, %v1780
    %1782 = vmatmul.f32.gmra.mxu0 %v1429
    %v1783 = vpop.f32.mrf.mxu0
    %v1784 = vadd.f32 %v1719, %v1783
    %1785 = vdwg.mxu0
    %v1786 = vmax.f32 %v1609, 0.0
    %v1787 = vmax.f32 %v1739, 0.0
    %v1788 = vmax.f32 %v1612, 0.0
    %v1789 = vmax.f32 %v1742, 0.0
    %v1790 = vmax.f32 %v1615, 0.0
    %v1791 = vmax.f32 %v1745, 0.0
    %v1792 = vmax.f32 %v1618, 0.0
    %v1793 = vmax.f32 %v1748, 0.0
    %v1794 = vmax.f32 %v1621, 0.0
    %v1795 = vmax.f32 %v1751, 0.0
    %v1796 = vmax.f32 %v1624, 0.0
    %v1797 = vmax.f32 %v1754, 0.0
    %v1798 = vmax.f32 %v1627, 0.0
    %v1799 = vmax.f32 %v1757, 0.0
    %v1800 = vmax.f32 %v1630, 0.0
    %v1801 = vmax.f32 %v1760, 0.0
    %v1802 = vmax.f32 %v1633, 0.0
    %v1803 = vmax.f32 %v1763, 0.0
    %v1804 = vmax.f32 %v1636, 0.0
    %v1805 = vmax.f32 %v1766, 0.0
    %v1806 = vmax.f32 %v1639, 0.0
    %v1807 = vmax.f32 %v1769, 0.0
    %v1808 = vmax.f32 %v1642, 0.0
    %v1809 = vmax.f32 %v1772, 0.0
    %v1810 = vmax.f32 %v1645, 0.0
    %v1811 = vmax.f32 %v1775, 0.0
    %v1812 = vmax.f32 %v1648, 0.0
    %v1813 = vmax.f32 %v1778, 0.0
    %v1814 = vmax.f32 %v1651, 0.0
    %v1815 = vmax.f32 %v1781, 0.0
    %v1816 = vmax.f32 %v1654, 0.0
    %v1817 = vmax.f32 %v1784, 0.0
    %v1818 = vld [vmem:[%s5] sm:$0xff]
    %v1819 = vld [vmem:[%s5 + $0x8] sm:$0xff]
    %v1820 = vld [vmem:[%s5 + $0x10] sm:$0xff]
    %v1821 = vld [vmem:[%s5 + $0x18] sm:$0xff]
    %v1822 = vld [vmem:[%s5 + $0x20] sm:$0xff]
    %v1823 = vld [vmem:[%s5 + $0x28] sm:$0xff]
    %v1824 = vld [vmem:[%s5 + $0x30] sm:$0xff]
    %v1825 = vld [vmem:[%s5 + $0x38] sm:$0xff]
    %v1826 = vld [vmem:[%s5 + $0x40] sm:$0xff]
    %v1827 = vld [vmem:[%s5 + $0x48] sm:$0xff]
    %v1828 = vld [vmem:[%s5 + $0x50] sm:$0xff]
    %v1829 = vld [vmem:[%s5 + $0x58] sm:$0xff]
    %v1830 = vld [vmem:[%s5 + $0x60] sm:$0xff]
    %v1831 = vld [vmem:[%s5 + $0x68] sm:$0xff]
    %v1832 = vld [vmem:[%s5 + $0x70] sm:$0xff]
    %v1833 = vld [vmem:[%s5 + $0x78] sm:$0xff]
    %1835 = vset.pattern.permute.xlu0 0
    %1836 = vperm.xlu0 %1835, %v1818
    %v1837 = vpop.permute.xlu0 %1836
    %1840 = vset.pattern.permute.xlu0 0
    %1841 = vperm.xlu0 %1840, %v1819
    %v1842 = vpop.permute.xlu0 %1841
    %1845 = vset.pattern.permute.xlu0 0
    %1846 = vperm.xlu0 %1845, %v1820
    %v1847 = vpop.permute.xlu0 %1846
    %1850 = vset.pattern.permute.xlu0 0
    %1851 = vperm.xlu0 %1850, %v1821
    %v1852 = vpop.permute.xlu0 %1851
    %1855 = vset.pattern.permute.xlu0 0
    %1856 = vperm.xlu0 %1855, %v1822
    %v1857 = vpop.permute.xlu0 %1856
    %1860 = vset.pattern.permute.xlu0 0
    %1861 = vperm.xlu0 %1860, %v1823
    %v1862 = vpop.permute.xlu0 %1861
    %1865 = vset.pattern.permute.xlu0 0
    %1866 = vperm.xlu0 %1865, %v1824
    %v1867 = vpop.permute.xlu0 %1866
    %1870 = vset.pattern.permute.xlu0 0
    %1871 = vperm.xlu0 %1870, %v1825
    %v1872 = vpop.permute.xlu0 %1871
    %1875 = vset.pattern.permute.xlu0 0
    %1876 = vperm.xlu0 %1875, %v1826
    %v1877 = vpop.permute.xlu0 %1876
    %1880 = vset.pattern.permute.xlu0 0
    %1881 = vperm.xlu0 %1880, %v1827
    %v1882 = vpop.permute.xlu0 %1881
    %1885 = vset.pattern.permute.xlu0 0
    %1886 = vperm.xlu0 %1885, %v1828
    %v1887 = vpop.permute.xlu0 %1886
    %1890 = vset.pattern.permute.xlu0 0
    %1891 = vperm.xlu0 %1890, %v1829
    %v1892 = vpop.permute.xlu0 %1891
    %1895 = vset.pattern.permute.xlu0 0
    %1896 = vperm.xlu0 %1895, %v1830
    %v1897 = vpop.permute.xlu0 %1896
    %1900 = vset.pattern.permute.xlu0 0
    %1901 = vperm.xlu0 %1900, %v1831
    %v1902 = vpop.permute.xlu0 %1901
    %1905 = vset.pattern.permute.xlu0 0
    %1906 = vperm.xlu0 %1905, %v1832
    %v1907 = vpop.permute.xlu0 %1906
    %1910 = vset.pattern.permute.xlu0 0
    %1911 = vperm.xlu0 %1910, %v1833
    %v1912 = vpop.permute.xlu0 %1911
    %v1914 = vmul.f32 %v1786, %v1837
    %v1915 = vmul.f32 %v1787, %v1837
    %v1916 = vmul.f32 %v1788, %v1842
    %v1917 = vmul.f32 %v1789, %v1842
    %v1918 = vmul.f32 %v1790, %v1847
    %v1919 = vmul.f32 %v1791, %v1847
    %v1920 = vmul.f32 %v1792, %v1852
    %v1921 = vmul.f32 %v1793, %v1852
    %v1922 = vmul.f32 %v1794, %v1857
    %v1923 = vmul.f32 %v1795, %v1857
    %v1924 = vmul.f32 %v1796, %v1862
    %v1925 = vmul.f32 %v1797, %v1862
    %v1926 = vmul.f32 %v1798, %v1867
    %v1927 = vmul.f32 %v1799, %v1867
    %v1928 = vmul.f32 %v1800, %v1872
    %v1929 = vmul.f32 %v1801, %v1872
    %v1930 = vmul.f32 %v1802, %v1877
    %v1931 = vmul.f32 %v1803, %v1877
    %v1932 = vmul.f32 %v1804, %v1882
    %v1933 = vmul.f32 %v1805, %v1882
    %v1934 = vmul.f32 %v1806, %v1887
    %v1935 = vmul.f32 %v1807, %v1887
    %v1936 = vmul.f32 %v1808, %v1892
    %v1937 = vmul.f32 %v1809, %v1892
    %v1938 = vmul.f32 %v1810, %v1897
    %v1939 = vmul.f32 %v1811, %v1897
    %v1940 = vmul.f32 %v1812, %v1902
    %v1941 = vmul.f32 %v1813, %v1902
    %v1942 = vmul.f32 %v1814, %v1907
    %v1943 = vmul.f32 %v1815, %v1907
    %v1944 = vmul.f32 %v1816, %v1912
    %v1945 = vmul.f32 %v1817, %v1912
    %v1946 = vadd.f32 %v1914, %v1916
    %v1947 = vadd.f32 %v1946, %v1918
    %v1948 = vadd.f32 %v1947, %v1920
    %v1949 = vadd.f32 %v1948, %v1922
    %v1950 = vadd.f32 %v1949, %v1924
    %v1951 = vadd.f32 %v1950, %v1926
    %v1952 = vadd.f32 %v1951, %v1928
    %v1953 = vadd.f32 %v1952, %v1930
    %v1954 = vadd.f32 %v1953, %v1932
    %v1955 = vadd.f32 %v1954, %v1934
    %v1956 = vadd.f32 %v1955, %v1936
    %v1957 = vadd.f32 %v1956, %v1938
    %v1958 = vadd.f32 %v1957, %v1940
    %v1959 = vadd.f32 %v1958, %v1942
    %v1960 = vadd.f32 %v1959, %v1944
    %v1961 = vrot.slane %v1960, 4
    %v1962 = vadd.f32 %v1960, %v1961
    %v1963 = vrot.slane %v1962, 2
    %v1964 = vadd.f32 %v1962, %v1963
    %v1965 = vrot.slane %v1964, 1
    %v1966 = vadd.f32 %v1964, %v1965
    %v1967 = vadd.f32 %v1915, %v1917
    %v1968 = vadd.f32 %v1967, %v1919
    %v1969 = vadd.f32 %v1968, %v1921
    %v1970 = vadd.f32 %v1969, %v1923
    %v1971 = vadd.f32 %v1970, %v1925
    %v1972 = vadd.f32 %v1971, %v1927
    %v1973 = vadd.f32 %v1972, %v1929
    %v1974 = vadd.f32 %v1973, %v1931
    %v1975 = vadd.f32 %v1974, %v1933
    %v1976 = vadd.f32 %v1975, %v1935
    %v1977 = vadd.f32 %v1976, %v1937
    %v1978 = vadd.f32 %v1977, %v1939
    %v1979 = vadd.f32 %v1978, %v1941
    %v1980 = vadd.f32 %v1979, %v1943
    %v1981 = vadd.f32 %v1980, %v1945
    %v1982 = vrot.slane %v1981, 4
    %v1983 = vadd.f32 %v1981, %v1982
    %v1984 = vrot.slane %v1983, 2
    %v1985 = vadd.f32 %v1983, %v1984
    %v1986 = vrot.slane %v1985, 1
    %v1987 = vadd.f32 %v1985, %v1986
    %s1988 = sld [smem:[#allocation2]]
    %v1989 = vstv %s1988
    %v1990 = vadd.f32 %v1966, %v1989
    %v1991 = vadd.f32 %v1987, %v1989
    %v1994 = vrot.slane %v1991, 7
    %vm1995 = vcmask 1040384
    %v1996 = vsel %vm1995, %v1990, %v1994
    %v1998 = vlaneseq
    %vm1999 = vcmp.ge.s32.totalorder %v1998, 0
    %vm2000 = vcmp.lt.s32.totalorder %v1998, 256
    %vm2001 = vmand %vm1999, %vm2000
    %2002 = vst.msk [vmem:[#allocation3] sm:$0x3] %vm2001, %v1996
    // Predicated region
    $region30: #{tpu_custom_call.1} parent=1 // pred_check
      _
    $region31: #{tpu_custom_call.1} parent=1 // pred_check_branch
      %2004 = sbr.rel (0) target = $region33
    $region32: #{tpu_custom_call.1} parent=1 // pred_region
      %2006 = vsyncadd [#allocation4], 0
      %s2008 = sshll.u32 [#allocation3], 4
      %s2009 = int_to_ptr.vmem [resolvable:$true] %s2008
      %s2010 = sshll.u32 %s7, 4
      %s2011 = int_to_ptr.hbm [resolvable:$true] %s2010
      %2013 = dma.vmem_to_hbm [thread:$0]  %s2009, 32, %s2011, [#allocation4]
    $region33: #{tpu_custom_call.1} parent=1 // pred_fallthru
      _
    // Predicated region
    $region34: #{tpu_custom_call.1} parent=1 // pred_check
      _
    $region35: #{tpu_custom_call.1} parent=1 // pred_check_branch
      %2015 = sbr.rel (0) target = $region37
    $region36: #{tpu_custom_call.1} parent=1 // pred_region
      %2017 = dma.done [#allocation4], 32
    $region37: #{tpu_custom_call.1} parent=1 // pred_fallthru
      _
    %2018 = vsyncpa [#allocation4], 1

</llo_original>
